<compile_context>
chip_gen: v7x
topology: tpu7x:2x2x1
jax: 0.10.0
libtpu: 0.0.40
codegen_flags: <defaults>
</compile_context>

<pallas_src>
import functools

import jax
import jax.numpy as jnp
import numpy as np
from jax.experimental import pallas as pl
from jax.experimental.pallas import tpu as pltpu


# ----------------------------------------------------------------------------
# Pallas kernel
# ----------------------------------------------------------------------------
def _conv3x3_bias_relu(x, w_mat, bias, mask, width):
    """3x3 conv (padding=1) + (BN-folded) bias + ReLU in channels-first flattened layout.

    x:     (C, L)      f32 activations; L = Bblk * H * W (batch folded onto lanes).
    w_mat: (Cout, 9*C) bf16 BN-folded weights, tap-major columns (k = ky*3 + kx).
    bias:  (Cout, 1)   f32 BN-folded bias.
    mask:  (9*C, L)    f32 channel-replicated in-bounds mask (1.0 valid / 0.0 halo);
                       also zeroes taps that wrap across batch / lane-axis boundaries.
    """
    C, L = x.shape
    blocks = []
    for dy in (-1, 0, 1):
        for dx in (-1, 0, 1):
            off = dy * width + dx
            # shifted[c, p] = x[c, (p + off) mod L]; out-of-image / cross-batch reads
            # are zeroed by `mask`.  Lane roll -> XLU slot, no VMEM copies.
            blocks.append(x if off == 0 else pltpu.roll(x, shift=(-off) % L, axis=1))
    # 8-aligned sublane stack (C % 8 == 0) -> one dense f32 mask multiply (no 1->C
    # sublane broadcasts) -> one im2col MXU matmul with bf16 operands, f32 accumulate.
    patches = jnp.concatenate(blocks, axis=0) * mask                       # (9C, L) f32
    acc = jnp.dot(w_mat, patches.astype(jnp.bfloat16),
                  preferred_element_type=jnp.float32)                      # (Cout, L) f32
    return jnp.maximum(acc + bias, 0.0)


def up_kernel(x1_ref, x2_ref, ut_ref, m1_ref, m2_ref,
              w1_ref, b1_ref, w2_ref, b2_ref, o_ref, *, width, bblk):
    p2 = x2_ref.shape[-1]

    # ---- bilinear upsample (align_corners=True): one bf16 matmul per image ----
    ups = [jnp.dot(x1_ref[b].astype(jnp.bfloat16), ut_ref[...],
                   preferred_element_type=jnp.float32) for b in range(bblk)]
    x1_up = ups[0] if bblk == 1 else jnp.concatenate(ups, axis=1)          # (C1p, L)

    # ---- fold the batch block onto the lane axis (p2 % 128 == 0 -> aligned concat) ----
    x2s = [x2_ref[b] for b in range(bblk)]
    x2_t = x2s[0] if bblk == 1 else jnp.concatenate(x2s, axis=1)           # (C2p, L)

    # ---- torch.cat([x2, x1], dim=1): both halves are 8-sublane aligned -> clean stack ----
    x = jnp.concatenate([x2_t, x1_up], axis=0)                             # (Cin_p, L)

    # ---- [conv3x3 -> folded-BN bias -> ReLU] x 2 ----
    y = _conv3x3_bias_relu(x, w1_ref[...], b1_ref[...], m1_ref[...], width)
    y = _conv3x3_bias_relu(y, w2_ref[...], b2_ref[...], m2_ref[...], width)

    # ---- per-image lane-dense stores (static, 128-lane-group aligned slices) ----
    for b in range(bblk):
        o_ref[b] = y[:, b * p2:(b + 1) * p2].astype(o_ref.dtype)


def up_forward(x1_flat, x2_flat, ut, w1_mat, b1, w2_mat, b2, *, width, batch_block=8):
    """x1_flat: (B, C1p, H*W), x2_flat: (B, C2p, H2*W2); channel counts padded to multiples
    of 8 (matching zero weight columns in w1_mat).  Returns (B, Cout, H2*W2) float32."""
    B, C1p, HW = x1_flat.shape
    _, C2p, P2 = x2_flat.shape
    Cin_p = C1p + C2p
    Cmid, K1 = w1_mat.shape
    Cout, K2 = w2_mat.shape
    height = P2 // width

    bblk = max(1, min(batch_block, B))
    pad_b = (-B) % bblk
    if pad_b:
        x1_flat = jnp.pad(x1_flat, ((0, pad_b), (0, 0), (0, 0)))
        x2_flat = jnp.pad(x2_flat, ((0, pad_b), (0, 0), (0, 0)))
    Bp = B + pad_b
    L = bblk * P2

    # Channel-replicated, batch-tiled halo masks (tap-major, matching the im2col stack).
    base = np.tile(shift_masks(height, width), (1, bblk))                  # (9, L)
    mask1 = jnp.asarray(np.repeat(base, Cin_p, axis=0))                    # (9*Cin_p, L)
    mask2 = jnp.asarray(np.repeat(base, Cmid, axis=0))                     # (9*Cmid,  L)

    # Explicit VMEM budget (feedback: v7x has 64 MiB physical vs 128 MiB on v5e/v6e and a
    # 32 MiB default scoped limit; BlockSpec double-buffers every input).
    block_bytes = (bblk * C1p * HW * 4 + bblk * C2p * P2 * 4 + HW * P2 * 2
                   + 9 * Cin_p * L * 4 + 9 * Cmid * L * 4
                   + Cmid * K1 * 2 + Cmid * 4 + Cout * K2 * 2 + Cout * 4
                   + bblk * Cout * P2 * 4)
    vmem_limit = int(min(max(4 * block_bytes + (8 << 20), 16 << 20), 56 << 20))

    kernel = functools.partial(up_kernel, width=width, bblk=bblk)
    out = pl.pallas_call(
        kernel,
        out_shape=jax.ShapeDtypeStruct((Bp, Cout, P2), jnp.float32),
        grid=(Bp // bblk,),
        in_specs=[
            pl.BlockSpec((bblk, C1p, HW), lambda g: (g, 0, 0)),
            pl.BlockSpec((bblk, C2p, P2), lambda g: (g, 0, 0)),
            # Grid-invariant operands (constant index maps).
            pl.BlockSpec((HW, P2), lambda g: (0, 0)),
            pl.BlockSpec((9 * Cin_p, L), lambda g: (0, 0)),
            pl.BlockSpec((9 * Cmid, L), lambda g: (0, 0)),
            pl.BlockSpec((Cmid, K1), lambda g: (0, 0)),
            pl.BlockSpec((Cmid, 1), lambda g: (0, 0)),
            pl.BlockSpec((Cout, K2), lambda g: (0, 0)),
            pl.BlockSpec((Cout, 1), lambda g: (0, 0)),
        ],
        out_specs=pl.BlockSpec((bblk, Cout, P2), lambda g: (g, 0, 0)),
        compiler_params=pltpu.CompilerParams(
            dimension_semantics=("parallel",),
            vmem_limit_bytes=vmem_limit),
    )(x1_flat, x2_flat, ut, mask1, mask2, w1_mat, b1, w2_mat, b2)
    return out[:B] if pad_b else out


# ----------------------------------------------------------------------------
# Helpers (host-side glue)
# ----------------------------------------------------------------------------
def round_up(n, m):
    return ((n + m - 1) // m) * m


def interp_matrix(n_in, n_out):
    """Matrix M (n_out, n_in) s.t. M @ v is 1-D linear resize with align_corners=True."""
    m = np.zeros((n_out, n_in), dtype=np.float32)
    if n_in == 1 or n_out == 1:
        m[:, 0] = 1.0
        return m
    for i in range(n_out):
        src = i * (n_in - 1) / (n_out - 1)
        lo = int(np.floor(src))
        hi = min(lo + 1, n_in - 1)
        frac = src - lo
        m[i, lo] += 1.0 - frac
        m[i, hi] += frac
    return m


def shift_masks(h, w):
    """(9, h*w) f32: mask[k, p]=1 iff the (dy,dx)=(k//3-1, k%3-1)-shifted pixel is in-bounds."""
    hh, ww = np.meshgrid(np.arange(h), np.arange(w), indexing='ij')
    hh = hh.reshape(-1)
    ww = ww.reshape(-1)
    m = np.zeros((9, h * w), dtype=np.float32)
    k = 0
    for dy in (-1, 0, 1):
        for dx in (-1, 0, 1):
            valid = (hh + dy >= 0) & (hh + dy < h) & (ww + dx >= 0) & (ww + dx < w)
            m[k] = valid.astype(np.float32)
            k += 1
    return m


def ref_forward(x1, x2, uh, uw, w1, g1, be1, m1, v1, w2, g2, be2, m2, v2, eps):
    """Pure-JAX NCHW reference of the PyTorch Up.forward (eval-mode BN), f32 precision."""
    up = jnp.einsum('ih,jw,nchw->ncij', uh, uw, x1,
                    precision=jax.lax.Precision.HIGHEST)
    x = jnp.concatenate([x2, up], axis=1)

    def conv_bn_relu(x, w, g, be, m, v):
        y = jax.lax.conv_general_dilated(
            x, w, window_strides=(1, 1), padding=[(1, 1), (1, 1)],
            dimension_numbers=('NCHW', 'OIHW', 'NCHW'),
            precision=jax.lax.Precision.HIGHEST)
        s = g / jnp.sqrt(v + eps)
        b = be - m * s
        return jnp.maximum(y * s[None, :, None, None] + b[None, :, None, None], 0.0)

    y = conv_bn_relu(x, w1, g1, be1, m1, v1)
    return conv_bn_relu(y, w2, g2, be2, m2, v2)


# ----------------------------------------------------------------------------
if __name__ == "__main__":
    # Shapes consistent with Up(in_channels=8, out_channels=8, scale_factor=2).
    B, C1, H, W = 4, 4, 8, 8          # x1 (low-res feature, NCHW)
    C2 = 4                            # x2 (skip feature at 2x resolution)
    scale = 2
    H2, W2 = H * scale, W * scale
    Cin = C1 + C2
    Cmid = Cout = 8
    eps = 1e-5
    BATCH_BLOCK = 2                   # images folded onto lanes per grid step

    key = jax.random.PRNGKey(0)
    k = jax.random.split(key, 12)

    # Inputs in PyTorch NCHW convention.
    x1_nchw = jax.random.normal(k[0], (B, C1, H, W), jnp.float32)
    x2_nchw = jax.random.normal(k[1], (B, C2, H2, W2), jnp.float32)

    # Conv weights in PyTorch OIHW layout; BatchNorm params (eval mode).
    w1_oihw = 0.1 * jax.random.normal(k[2], (Cmid, Cin, 3, 3), jnp.float32)
    w2_oihw = 0.1 * jax.random.normal(k[3], (Cout, Cmid, 3, 3), jnp.float32)
    gamma1 = 1.0 + 0.1 * jax.random.normal(k[4], (Cmid,), jnp.float32)
    beta1 = 0.1 * jax.random.normal(k[5], (Cmid,), jnp.float32)
    mean1 = 0.1 * jax.random.normal(k[6], (Cmid,), jnp.float32)
    var1 = jnp.abs(1.0 + 0.1 * jax.random.normal(k[7], (Cmid,), jnp.float32))
    gamma2 = 1.0 + 0.1 * jax.random.normal(k[8], (Cout,), jnp.float32)
    beta2 = 0.1 * jax.random.normal(k[9], (Cout,), jnp.float32)
    mean2 = 0.1 * jax.random.normal(k[10], (Cout,), jnp.float32)
    var2 = jnp.abs(1.0 + 0.1 * jax.random.normal(k[11], (Cout,), jnp.float32))

    # ---- host-side prep for the kernel ----
    # Pad channel counts to multiples of 8 for aligned sublane stacks.
    C1p, C2p = round_up(C1, 8), round_up(C2, 8)
    Cin_p = C1p + C2p
    x1_pad = jnp.pad(x1_nchw, ((0, 0), (0, C1p - C1), (0, 0), (0, 0)))
    x2_pad = jnp.pad(x2_nchw, ((0, 0), (0, C2p - C2), (0, 0), (0, 0)))
    x1_flat = x1_pad.reshape(B, C1p, H * W)
    x2_flat = x2_pad.reshape(B, C2p, H2 * W2)

    # Fold eval-mode BN scale into the conv weights; keep only the bias.
    s1 = gamma1 / jnp.sqrt(var1 + eps)
    bias1 = beta1 - mean1 * s1
    s2 = gamma2 / jnp.sqrt(var2 + eps)
    bias2 = beta2 - mean2 * s2
    w1_folded = w1_oihw * s1[:, None, None, None]
    w2_folded = w2_oihw * s2[:, None, None, None]

    # conv1 weights with zero columns for the padded channels; concat order in the kernel
    # is [x2 (0..C2p-1), x1 (C2p..C2p+C1p-1)], matching torch.cat([x2, x1], dim=1).
    w1_ext = jnp.zeros((Cmid, Cin_p, 3, 3), jnp.float32)
    w1_ext = w1_ext.at[:, :C2].set(w1_folded[:, :C2])
    w1_ext = w1_ext.at[:, C2p:C2p + C1].set(w1_folded[:, C2:])
    # (Cout, Cin, 3, 3) -> (Cout, 9*Cin), tap-major (k = ky*3 + kx); bf16 MXU operands.
    w1_mat = jnp.transpose(w1_ext, (0, 2, 3, 1)).reshape(Cmid, 9 * Cin_p).astype(jnp.bfloat16)
    w2_mat = jnp.transpose(w2_folded, (0, 2, 3, 1)).reshape(Cout, 9 * Cmid).astype(jnp.bfloat16)

    # Bilinear (align_corners=True) upsample as one Kronecker matrix, transposed, bf16.
    # TODO(synk): for large spatial sizes switch to a separable (Uw then Uh) upsample;
    # the Kronecker matrix scales O((H*W)^2) and stops fitting v7x VMEM beyond ~40x40.
    uh = interp_matrix(H, H2)
    uw = interp_matrix(W, W2)
    ut = jnp.asarray(np.kron(uh, uw).T, dtype=jnp.bfloat16)   # (H*W, H2*W2)

    out_flat = up_forward(x1_flat, x2_flat, ut,
                          w1_mat, bias1.reshape(-1, 1).astype(jnp.float32),
                          w2_mat, bias2.reshape(-1, 1).astype(jnp.float32),
                          width=W2, batch_block=BATCH_BLOCK)
    out = jax.block_until_ready(out_flat).reshape(B, Cout, H2, W2)   # NCHW, like PyTorch

    ref = ref_forward(x1_nchw, x2_nchw, jnp.asarray(uh), jnp.asarray(uw),
                      w1_oihw, gamma1, beta1, mean1, var1,
                      w2_oihw, gamma2, beta2, mean2, var2, eps)
    ref = jax.block_until_ready(ref)

    # bf16 MXU operands with f32 accumulation -> ~1e-2-level worst-case error vs f32 ref.
    if not jnp.allclose(out, ref, rtol=3e-2, atol=3e-2):
        max_err = float(jnp.max(jnp.abs(out - ref)))
        raise AssertionError(f"Pallas kernel mismatch vs reference, max abs err = {max_err}")

    print("KERNEL_OK")
</pallas_src>

<mosaic_0001>
module attributes {stable_mosaic.version = 11 : i64} {
  func.func @up_kernel(%arg0: i32, %arg1: memref<2x8x64xf32, #tpu.memory_space<vmem>>, %arg2: memref<2x8x256xf32, #tpu.memory_space<vmem>>, %arg3: memref<64x256xbf16, #tpu.memory_space<vmem>>, %arg4: memref<144x512xf32, #tpu.memory_space<vmem>>, %arg5: memref<72x512xf32, #tpu.memory_space<vmem>>, %arg6: memref<8x144xbf16, #tpu.memory_space<vmem>>, %arg7: memref<8x1xf32, #tpu.memory_space<vmem>>, %arg8: memref<8x72xbf16, #tpu.memory_space<vmem>>, %arg9: memref<8x1xf32, #tpu.memory_space<vmem>>, %arg10: memref<2x8x256xf32, #tpu.memory_space<vmem>>) attributes {dimension_semantics = [#tpu.dimension_semantics<parallel>], iteration_bounds = array<i64: 2>, scalar_prefetch = 0 : i64, scratch_operands = 0 : i64, tpu.core_type = #tpu.core_type<tc>, window_params = [{transform_indices = @transform_0, window_bounds = array<i64: 2, 8, 64>}, {transform_indices = @transform_1, window_bounds = array<i64: 2, 8, 256>}, {pipeline_mode = #tpu.pipeline_mode<synchronous>, transform_indices = @transform_2, window_bounds = array<i64: 64, 256>}, {pipeline_mode = #tpu.pipeline_mode<synchronous>, transform_indices = @transform_3, window_bounds = array<i64: 144, 512>}, {pipeline_mode = #tpu.pipeline_mode<synchronous>, transform_indices = @transform_4, window_bounds = array<i64: 72, 512>}, {pipeline_mode = #tpu.pipeline_mode<synchronous>, transform_indices = @transform_5, window_bounds = array<i64: 8, 144>}, {pipeline_mode = #tpu.pipeline_mode<synchronous>, transform_indices = @transform_6, window_bounds = array<i64: 8, 1>}, {pipeline_mode = #tpu.pipeline_mode<synchronous>, transform_indices = @transform_7, window_bounds = array<i64: 8, 72>}, {pipeline_mode = #tpu.pipeline_mode<synchronous>, transform_indices = @transform_8, window_bounds = array<i64: 8, 1>}, {transform_indices = @transform_9, window_bounds = array<i64: 2, 8, 256>}]} {
    %c0 = arith.constant 0 : index
    %c0_0 = arith.constant 0 : index
    %c0_1 = arith.constant 0 : index
    %0 = vector.load %arg1[%c0, %c0_0, %c0_1] : memref<2x8x64xf32, #tpu.memory_space<vmem>>, vector<1x8x64xf32>
    %1 = vector.shape_cast %0 : vector<1x8x64xf32> to vector<8x64xf32>
    %2 = arith.truncf %1 : vector<8x64xf32> to vector<8x64xbf16>
    %c0_2 = arith.constant 0 : index
    %c0_3 = arith.constant 0 : index
    %3 = vector.load %arg3[%c0_2, %c0_3] : memref<64x256xbf16, #tpu.memory_space<vmem>>, vector<64x256xbf16>
    %cst = arith.constant dense<0.000000e+00> : vector<8x256xf32>
    %4 = tpu.matmul %2, %3, %cst {dimension_numbers = #tpu.dot_dimension_numbers<[1], [0], [0], [1], [0, 0, 1, 1], [], []>} : vector<8x64xbf16>, vector<64x256xbf16>, vector<8x256xf32> -> vector<8x256xf32>
    %c1 = arith.constant 1 : index
    %c0_4 = arith.constant 0 : index
    %c0_5 = arith.constant 0 : index
    %5 = vector.load %arg1[%c1, %c0_4, %c0_5] : memref<2x8x64xf32, #tpu.memory_space<vmem>>, vector<1x8x64xf32>
    %6 = vector.shape_cast %5 : vector<1x8x64xf32> to vector<8x64xf32>
    %7 = arith.truncf %6 : vector<8x64xf32> to vector<8x64xbf16>
    %c0_6 = arith.constant 0 : index
    %c0_7 = arith.constant 0 : index
    %8 = vector.load %arg3[%c0_6, %c0_7] : memref<64x256xbf16, #tpu.memory_space<vmem>>, vector<64x256xbf16>
    %cst_8 = arith.constant dense<0.000000e+00> : vector<8x256xf32>
    %9 = tpu.matmul %7, %8, %cst_8 {dimension_numbers = #tpu.dot_dimension_numbers<[1], [0], [0], [1], [0, 0, 1, 1], [], []>} : vector<8x64xbf16>, vector<64x256xbf16>, vector<8x256xf32> -> vector<8x256xf32>
    %10 = tpu.concatenate %4, %9 in 1 : vector<8x256xf32>, vector<8x256xf32> -> vector<8x512xf32>
    %c0_9 = arith.constant 0 : index
    %c0_10 = arith.constant 0 : index
    %c0_11 = arith.constant 0 : index
    %11 = vector.load %arg2[%c0_9, %c0_10, %c0_11] : memref<2x8x256xf32, #tpu.memory_space<vmem>>, vector<1x8x256xf32>
    %12 = vector.shape_cast %11 : vector<1x8x256xf32> to vector<8x256xf32>
    %c1_12 = arith.constant 1 : index
    %c0_13 = arith.constant 0 : index
    %c0_14 = arith.constant 0 : index
    %13 = vector.load %arg2[%c1_12, %c0_13, %c0_14] : memref<2x8x256xf32, #tpu.memory_space<vmem>>, vector<1x8x256xf32>
    %14 = vector.shape_cast %13 : vector<1x8x256xf32> to vector<8x256xf32>
    %15 = tpu.concatenate %12, %14 in 1 : vector<8x256xf32>, vector<8x256xf32> -> vector<8x512xf32>
    %16 = tpu.concatenate %15, %10 in 0 : vector<8x512xf32>, vector<8x512xf32> -> vector<16x512xf32>
    %c0_15 = arith.constant 0 : index
    %c0_16 = arith.constant 0 : index
    %17 = vector.load %arg6[%c0_15, %c0_16] : memref<8x144xbf16, #tpu.memory_space<vmem>>, vector<8x144xbf16>
    %c0_17 = arith.constant 0 : index
    %c0_18 = arith.constant 0 : index
    %18 = vector.load %arg7[%c0_17, %c0_18] : memref<8x1xf32, #tpu.memory_space<vmem>>, vector<8x1xf32>
    %c0_19 = arith.constant 0 : index
    %c0_20 = arith.constant 0 : index
    %19 = vector.load %arg4[%c0_19, %c0_20] : memref<144x512xf32, #tpu.memory_space<vmem>>, vector<144x512xf32>
    %c17_i32 = arith.constant 17 : i32
    %20 = tpu.dynamic_rotate %16 by %c17_i32 dim 1 : vector<16x512xf32>, i32 -> vector<16x512xf32>
    %c16_i32 = arith.constant 16 : i32
    %21 = tpu.dynamic_rotate %16 by %c16_i32 dim 1 : vector<16x512xf32>, i32 -> vector<16x512xf32>
    %c15_i32 = arith.constant 15 : i32
    %22 = tpu.dynamic_rotate %16 by %c15_i32 dim 1 : vector<16x512xf32>, i32 -> vector<16x512xf32>
    %c1_i32 = arith.constant 1 : i32
    %23 = tpu.dynamic_rotate %16 by %c1_i32 dim 1 : vector<16x512xf32>, i32 -> vector<16x512xf32>
    %c511_i32 = arith.constant 511 : i32
    %24 = tpu.dynamic_rotate %16 by %c511_i32 dim 1 : vector<16x512xf32>, i32 -> vector<16x512xf32>
    %c497_i32 = arith.constant 497 : i32
    %25 = tpu.dynamic_rotate %16 by %c497_i32 dim 1 : vector<16x512xf32>, i32 -> vector<16x512xf32>
    %c496_i32 = arith.constant 496 : i32
    %26 = tpu.dynamic_rotate %16 by %c496_i32 dim 1 : vector<16x512xf32>, i32 -> vector<16x512xf32>
    %c495_i32 = arith.constant 495 : i32
    %27 = tpu.dynamic_rotate %16 by %c495_i32 dim 1 : vector<16x512xf32>, i32 -> vector<16x512xf32>
    %28 = tpu.concatenate %20, %21, %22, %23, %16, %24, %25, %26, %27 in 0 : vector<16x512xf32>, vector<16x512xf32>, vector<16x512xf32>, vector<16x512xf32>, vector<16x512xf32>, vector<16x512xf32>, vector<16x512xf32>, vector<16x512xf32>, vector<16x512xf32> -> vector<144x512xf32>
    %29 = arith.mulf %28, %19 : vector<144x512xf32>
    %30 = arith.truncf %29 : vector<144x512xf32> to vector<144x512xbf16>
    %cst_21 = arith.constant dense<0.000000e+00> : vector<8x512xf32>
    %31 = tpu.matmul %17, %30, %cst_21 {dimension_numbers = #tpu.dot_dimension_numbers<[1], [0], [0], [1], [0, 0, 1, 1], [], []>} : vector<8x144xbf16>, vector<144x512xbf16>, vector<8x512xf32> -> vector<8x512xf32>
    %32 = vector.broadcast %18 : vector<8x1xf32> to vector<8x512xf32>
    %33 = arith.addf %31, %32 : vector<8x512xf32>
    %cst_22 = arith.constant 0.000000e+00 : f32
    %34 = vector.broadcast %cst_22 : f32 to vector<8x512xf32>
    %35 = arith.maximumf %33, %34 : vector<8x512xf32>
    %c0_23 = arith.constant 0 : index
    %c0_24 = arith.constant 0 : index
    %36 = vector.load %arg8[%c0_23, %c0_24] : memref<8x72xbf16, #tpu.memory_space<vmem>>, vector<8x72xbf16>
    %c0_25 = arith.constant 0 : index
    %c0_26 = arith.constant 0 : index
    %37 = vector.load %arg9[%c0_25, %c0_26] : memref<8x1xf32, #tpu.memory_space<vmem>>, vector<8x1xf32>
    %c0_27 = arith.constant 0 : index
    %c0_28 = arith.constant 0 : index
    %38 = vector.load %arg5[%c0_27, %c0_28] : memref<72x512xf32, #tpu.memory_space<vmem>>, vector<72x512xf32>
    %c17_i32_29 = arith.constant 17 : i32
    %39 = tpu.dynamic_rotate %35 by %c17_i32_29 dim 1 : vector<8x512xf32>, i32 -> vector<8x512xf32>
    %c16_i32_30 = arith.constant 16 : i32
    %40 = tpu.dynamic_rotate %35 by %c16_i32_30 dim 1 : vector<8x512xf32>, i32 -> vector<8x512xf32>
    %c15_i32_31 = arith.constant 15 : i32
    %41 = tpu.dynamic_rotate %35 by %c15_i32_31 dim 1 : vector<8x512xf32>, i32 -> vector<8x512xf32>
    %c1_i32_32 = arith.constant 1 : i32
    %42 = tpu.dynamic_rotate %35 by %c1_i32_32 dim 1 : vector<8x512xf32>, i32 -> vector<8x512xf32>
    %c511_i32_33 = arith.constant 511 : i32
    %43 = tpu.dynamic_rotate %35 by %c511_i32_33 dim 1 : vector<8x512xf32>, i32 -> vector<8x512xf32>
    %c497_i32_34 = arith.constant 497 : i32
    %44 = tpu.dynamic_rotate %35 by %c497_i32_34 dim 1 : vector<8x512xf32>, i32 -> vector<8x512xf32>
    %c496_i32_35 = arith.constant 496 : i32
    %45 = tpu.dynamic_rotate %35 by %c496_i32_35 dim 1 : vector<8x512xf32>, i32 -> vector<8x512xf32>
    %c495_i32_36 = arith.constant 495 : i32
    %46 = tpu.dynamic_rotate %35 by %c495_i32_36 dim 1 : vector<8x512xf32>, i32 -> vector<8x512xf32>
    %47 = tpu.concatenate %39, %40, %41, %42, %35, %43, %44, %45, %46 in 0 : vector<8x512xf32>, vector<8x512xf32>, vector<8x512xf32>, vector<8x512xf32>, vector<8x512xf32>, vector<8x512xf32>, vector<8x512xf32>, vector<8x512xf32>, vector<8x512xf32> -> vector<72x512xf32>
    %48 = arith.mulf %47, %38 : vector<72x512xf32>
    %49 = arith.truncf %48 : vector<72x512xf32> to vector<72x512xbf16>
    %cst_37 = arith.constant dense<0.000000e+00> : vector<8x512xf32>
    %50 = tpu.matmul %36, %49, %cst_37 {dimension_numbers = #tpu.dot_dimension_numbers<[1], [0], [0], [1], [0, 0, 1, 1], [], []>} : vector<8x72xbf16>, vector<72x512xbf16>, vector<8x512xf32> -> vector<8x512xf32>
    %51 = vector.broadcast %37 : vector<8x1xf32> to vector<8x512xf32>
    %52 = arith.addf %50, %51 : vector<8x512xf32>
    %cst_38 = arith.constant 0.000000e+00 : f32
    %53 = vector.broadcast %cst_38 : f32 to vector<8x512xf32>
    %54 = arith.maximumf %52, %53 : vector<8x512xf32>
    %55 = vector.extract_strided_slice %54 {offsets = [0, 0], sizes = [8, 256], strides = [1, 1]} : vector<8x512xf32> to vector<8x256xf32>
    %c0_39 = arith.constant 0 : index
    %c0_40 = arith.constant 0 : index
    %c0_41 = arith.constant 0 : index
    %56 = vector.load %arg10[%c0_39, %c0_40, %c0_41] : memref<2x8x256xf32, #tpu.memory_space<vmem>>, vector<1x8x256xf32>
    %57 = vector.shape_cast %56 : vector<1x8x256xf32> to vector<8x256xf32>
    %58 = vector.shape_cast %55 : vector<8x256xf32> to vector<1x8x256xf32>
    tpu.vector_store %arg10[%c0_39, %c0_40, %c0_41], %58 {strides = array<i32>} : memref<2x8x256xf32, #tpu.memory_space<vmem>>, vector<1x8x256xf32>,
    %59 = vector.extract_strided_slice %54 {offsets = [0, 256], sizes = [8, 256], strides = [1, 1]} : vector<8x512xf32> to vector<8x256xf32>
    %c1_42 = arith.constant 1 : index
    %c0_43 = arith.constant 0 : index
    %c0_44 = arith.constant 0 : index
    %60 = vector.load %arg10[%c1_42, %c0_43, %c0_44] : memref<2x8x256xf32, #tpu.memory_space<vmem>>, vector<1x8x256xf32>
    %61 = vector.shape_cast %60 : vector<1x8x256xf32> to vector<8x256xf32>
    %62 = vector.shape_cast %59 : vector<8x256xf32> to vector<1x8x256xf32>
    tpu.vector_store %arg10[%c1_42, %c0_43, %c0_44], %62 {strides = array<i32>} : memref<2x8x256xf32, #tpu.memory_space<vmem>>, vector<1x8x256xf32>,
    return
  }
  func.func @transform_0(%arg0: i32) -> (i32, i32, i32) {
    %c0_i32 = arith.constant 0 : i32
    %c0_i32_0 = arith.constant 0 : i32
    %c0_i32_1 = arith.constant 0 : i32
    return %arg0, %c0_i32, %c0_i32_0 : i32, i32, i32
  }
  func.func @transform_1(%arg0: i32) -> (i32, i32, i32) {
    %c0_i32 = arith.constant 0 : i32
    %c0_i32_0 = arith.constant 0 : i32
    %c0_i32_1 = arith.constant 0 : i32
    return %arg0, %c0_i32, %c0_i32_0 : i32, i32, i32
  }
  func.func @transform_2(%arg0: i32) -> (i32, i32) {
    %c0_i32 = arith.constant 0 : i32
    %c0_i32_0 = arith.constant 0 : i32
    %c0_i32_1 = arith.constant 0 : i32
    return %c0_i32, %c0_i32_0 : i32, i32
  }
  func.func @transform_3(%arg0: i32) -> (i32, i32) {
    %c0_i32 = arith.constant 0 : i32
    %c0_i32_0 = arith.constant 0 : i32
    %c0_i32_1 = arith.constant 0 : i32
    return %c0_i32, %c0_i32_0 : i32, i32
  }
  func.func @transform_4(%arg0: i32) -> (i32, i32) {
    %c0_i32 = arith.constant 0 : i32
    %c0_i32_0 = arith.constant 0 : i32
    %c0_i32_1 = arith.constant 0 : i32
    return %c0_i32, %c0_i32_0 : i32, i32
  }
  func.func @transform_5(%arg0: i32) -> (i32, i32) {
    %c0_i32 = arith.constant 0 : i32
    %c0_i32_0 = arith.constant 0 : i32
    %c0_i32_1 = arith.constant 0 : i32
    return %c0_i32, %c0_i32_0 : i32, i32
  }
  func.func @transform_6(%arg0: i32) -> (i32, i32) {
    %c0_i32 = arith.constant 0 : i32
    %c0_i32_0 = arith.constant 0 : i32
    %c0_i32_1 = arith.constant 0 : i32
    return %c0_i32, %c0_i32_0 : i32, i32
  }
  func.func @transform_7(%arg0: i32) -> (i32, i32) {
    %c0_i32 = arith.constant 0 : i32
    %c0_i32_0 = arith.constant 0 : i32
    %c0_i32_1 = arith.constant 0 : i32
    return %c0_i32, %c0_i32_0 : i32, i32
  }
  func.func @transform_8(%arg0: i32) -> (i32, i32) {
    %c0_i32 = arith.constant 0 : i32
    %c0_i32_0 = arith.constant 0 : i32
    %c0_i32_1 = arith.constant 0 : i32
    return %c0_i32, %c0_i32_0 : i32, i32
  }
  func.func @transform_9(%arg0: i32) -> (i32, i32, i32) {
    %c0_i32 = arith.constant 0 : i32
    %c0_i32_0 = arith.constant 0 : i32
    %c0_i32_1 = arith.constant 0 : i32
    return %arg0, %c0_i32, %c0_i32_0 : i32, i32, i32
  }
}

</mosaic_0001>

<llo_original>
// kernel: tpu_custom_call.1
$region0: #{tpu_custom_call.1}
  #allocation0 [shape = 'u32[]', space=smem, size = 0x4, offset = 0x4, fixed_abs, tag = 'smem constant byte address 0x4 - core index']
  #allocation1 [shape = 'u32[144,128]{1,0:T(1,128)}', space=vmem, size = 0x12000, scoped, tag = 'internal scratch']
  %s0 = inlined_call_operand.hbm [shape: f32[4,8,64], index: 0, kind: input, shape index: {}]
  %s1 = inlined_call_operand.hbm [shape: f32[4,8,256], index: 1, kind: input, shape index: {}]
  %s2 = inlined_call_operand.hbm [shape: bf16[64,256], index: 2, kind: input, shape index: {}]
  %s3 = inlined_call_operand.hbm [shape: f32[144,512], index: 3, kind: input, shape index: {}]
  %s4 = inlined_call_operand.hbm [shape: f32[72,512], index: 4, kind: input, shape index: {}]
  %s5 = inlined_call_operand.vmem [shape: bf16[8,144], index: 5, kind: input, shape index: {}]
  %s6 = inlined_call_operand.vmem [shape: f32[8,1], index: 6, kind: input, shape index: {}]
  %s7 = inlined_call_operand.vmem [shape: bf16[8,72], index: 7, kind: input, shape index: {}]
  %s8 = inlined_call_operand.vmem [shape: f32[8,1], index: 8, kind: input, shape index: {}]
  %s9 = inlined_call_operand.hbm [shape: f32[4,8,256], index: 9, kind: output, shape index: {}]
  %s10 = sld [smem:[#allocation0]]
  $region89: #{tpu_custom_call.1} parent=0
    _
  %s12 = ssub.s32 1, %s10
  %s13 = scalar_select 0, %s12, %s10
  $region1: #{tpu_custom_call.1} parent=0
    #allocation2 [shape = 'u8[16384]{0}', space=vmem, size = 0x4000, scoped, tag = 'input window, operand 0']
    #allocation3 [shape = 's32[2]{0}', space=sflag, size = 0x8, scoped, tag = 'scoped memory for tpu_custom_call.1']
    #allocation4 [shape = 's32[2]{0}', space=sflag, size = 0x8, scoped, tag = 'scoped memory for tpu_custom_call.1']
    #allocation5 [shape = 'u8[32768]{0}', space=vmem, size = 0x8000, scoped, tag = 'input window, operand 1']
    #allocation6 [shape = 's32[2]{0}', space=sflag, size = 0x8, scoped, tag = 'scoped memory for tpu_custom_call.1']
    #allocation7 [shape = 'u8[32768]{0}', space=vmem, size = 0x8000, scoped, tag = 'input window, operand 2, single buffered']
    #allocation8 [shape = 'u8[294912]{0}', space=vmem, size = 0x48000, scoped, tag = 'input window, operand 3, single buffered']
    #allocation9 [shape = 's32[1]{0}', space=sflag, size = 0x4, scoped, tag = 'scoped memory for tpu_custom_call.1']
    #allocation10 [shape = 'u8[147456]{0}', space=vmem, size = 0x24000, scoped, tag = 'input window, operand 4, single buffered']
    #allocation11 [shape = 'u8[32768]{0}', space=vmem, size = 0x8000, scoped, tag = 'output window, operand 0']
    %14 = vsyncpa [#allocation3], 0
    %s15 = scalar_lea.sflag [#allocation3], 1
    %16 = vsyncpa %s15, 0
    %17 = vsyncpa [#allocation6], 0
    %s18 = scalar_lea.sflag [#allocation6], 1
    %19 = vsyncpa %s18, 0
    %20 = vsyncpa [#allocation9], 0
    %21 = vsyncpa [#allocation4], 0
    %s22 = scalar_lea.sflag [#allocation4], 1
    %23 = vsyncpa %s22, 0
    loop: start=0, step=1, limit=4
    $region2: #{tpu_custom_call.1} parent=1 // loop_pre_header
      _
    $region3: #{tpu_custom_call.1} parent=1 // loop_header
      %s25 = sphi 0, %s29
      %p26 = scmp.ge.s32.totalorder %s25, 4
      %s35 = sphi 0, %s37
      %s38 = sphi 0, %s35
      %s39 = sphi 0, %s38
      %s55 = sphi 0, %s39
      %s61 = sphi 0, %s63
      %s64 = sphi 0, %s61
      %s65 = sphi 0, %s64
      %s81 = sphi 0, %s65
      %s85 = sphi 0, %s85
      %s87 = sphi 0, %s85
      %s88 = sphi 0, %s87
      %s102 = sphi 0, %s88
      %s106 = sphi 0, %s106
      %s108 = sphi 0, %s106
      %s109 = sphi 0, %s108
      %s123 = sphi 0, %s109
      %s127 = sphi 0, %s127
      %s129 = sphi 0, %s127
      %s130 = sphi 0, %s129
      %s144 = sphi 0, %s130
      %s148 = sphi 0, %s148
      %s150 = sphi 0, %s148
      %s151 = sphi 0, %s150
      %s165 = sphi 0, %s151
      %s169 = sphi 0, %s169
      %s171 = sphi 0, %s169
      %s172 = sphi 0, %s171
      %s186 = sphi 0, %s172
      %s190 = sphi 0, %s190
      %s192 = sphi 0, %s190
      %s193 = sphi 0, %s192
      %s207 = sphi 0, %s193
      %s211 = sphi 0, %s211
      %s213 = sphi 0, %s211
      %s214 = sphi 0, %s213
      %s228 = sphi 0, %s214
      %s234 = sphi 0, %s236
      %s237 = sphi 0, %s234
      %s238 = sphi 0, %s237
      %s254 = sphi 0, %s238
    $region4: #{tpu_custom_call.1} parent=1 // loop_header_branch
      %28 = sbr.rel (%p26) target = $region8
    $region5: #{tpu_custom_call.1} parent=1 // loop_body
      %s30 = ssub.s32 %s25, 1
      %s31 = ssub.s32 %s25, 2
      %s32 = sadd.s32 %s25, 1
      %s33 = ssub.s32 %s25, %s32
      %p34 = scmp.eq.s32.totalorder %s33, 0
      %s36 = sadd.s32 %s35, 1
      %s37 = scalar_select %p34, %s35, %s36
      %p40 = pneg %p34
      %p41 = scmp.eq.s32.totalorder %s25, 1
      %p42 = por %p40, %p41
      %p43 = scmp.ne.s32.totalorder %s35, %s38
      %p44 = scmp.eq.s32.totalorder %s25, 0
      %p45 = por %p43, %p44
      %p46 = scmp.ne.s32.totalorder %s35, %s38
      %p47 = scmp.eq.s32.totalorder %s30, 1
      %p48 = por %p46, %p47
      %p49 = scmp.ne.s32.totalorder %s38, %s39
      %p50 = scmp.eq.s32.totalorder %s30, 0
      %p51 = por %p49, %p50
      %p52 = scmp.ne.s32.totalorder %s38, %s39
      %p53 = scmp.eq.s32.totalorder %s31, 1
      %p54 = por %p52, %p53
      %p56 = scmp.ne.s32.totalorder %s39, %s55
      %p57 = scmp.eq.s32.totalorder %s31, 0
      %p58 = por %p56, %p57
      %s59 = ssub.s32 %s25, %s32
      %p60 = scmp.eq.s32.totalorder %s59, 0
      %s62 = sadd.s32 %s61, 1
      %s63 = scalar_select %p60, %s61, %s62
      %p66 = pneg %p60
      %p67 = scmp.eq.s32.totalorder %s25, 1
      %p68 = por %p66, %p67
      %p69 = scmp.ne.s32.totalorder %s61, %s64
      %p70 = scmp.eq.s32.totalorder %s25, 0
      %p71 = por %p69, %p70
      %p72 = scmp.ne.s32.totalorder %s61, %s64
      %p73 = scmp.eq.s32.totalorder %s30, 1
      %p74 = por %p72, %p73
      %p75 = scmp.ne.s32.totalorder %s64, %s65
      %p76 = scmp.eq.s32.totalorder %s30, 0
      %p77 = por %p75, %p76
      %p78 = scmp.ne.s32.totalorder %s64, %s65
      %p79 = scmp.eq.s32.totalorder %s31, 1
      %p80 = por %p78, %p79
      %p82 = scmp.ne.s32.totalorder %s65, %s81
      %p83 = scmp.eq.s32.totalorder %s31, 0
      %p84 = por %p82, %p83
      %s86 = sadd.s32 %s85, 1
      %p89 = scmp.eq.s32.totalorder %s25, 1
      %p90 = scmp.ne.s32.totalorder %s85, %s87
      %p91 = scmp.eq.s32.totalorder %s25, 0
      %p92 = por %p90, %p91
      %p93 = scmp.ne.s32.totalorder %s85, %s87
      %p94 = scmp.eq.s32.totalorder %s30, 1
      %p95 = por %p93, %p94
      %p96 = scmp.ne.s32.totalorder %s87, %s88
      %p97 = scmp.eq.s32.totalorder %s30, 0
      %p98 = por %p96, %p97
      %p99 = scmp.ne.s32.totalorder %s87, %s88
      %p100 = scmp.eq.s32.totalorder %s31, 1
      %p101 = por %p99, %p100
      %p103 = scmp.ne.s32.totalorder %s88, %s102
      %p104 = scmp.eq.s32.totalorder %s31, 0
      %p105 = por %p103, %p104
      %s107 = sadd.s32 %s106, 1
      %p110 = scmp.eq.s32.totalorder %s25, 1
      %p111 = scmp.ne.s32.totalorder %s106, %s108
      %p112 = scmp.eq.s32.totalorder %s25, 0
      %p113 = por %p111, %p112
      %p114 = scmp.ne.s32.totalorder %s106, %s108
      %p115 = scmp.eq.s32.totalorder %s30, 1
      %p116 = por %p114, %p115
      %p117 = scmp.ne.s32.totalorder %s108, %s109
      %p118 = scmp.eq.s32.totalorder %s30, 0
      %p119 = por %p117, %p118
      %p120 = scmp.ne.s32.totalorder %s108, %s109
      %p121 = scmp.eq.s32.totalorder %s31, 1
      %p122 = por %p120, %p121
      %p124 = scmp.ne.s32.totalorder %s109, %s123
      %p125 = scmp.eq.s32.totalorder %s31, 0
      %p126 = por %p124, %p125
      %s128 = sadd.s32 %s127, 1
      %p131 = scmp.eq.s32.totalorder %s25, 1
      %p132 = scmp.ne.s32.totalorder %s127, %s129
      %p133 = scmp.eq.s32.totalorder %s25, 0
      %p134 = por %p132, %p133
      %p135 = scmp.ne.s32.totalorder %s127, %s129
      %p136 = scmp.eq.s32.totalorder %s30, 1
      %p137 = por %p135, %p136
      %p138 = scmp.ne.s32.totalorder %s129, %s130
      %p139 = scmp.eq.s32.totalorder %s30, 0
      %p140 = por %p138, %p139
      %p141 = scmp.ne.s32.totalorder %s129, %s130
      %p142 = scmp.eq.s32.totalorder %s31, 1
      %p143 = por %p141, %p142
      %p145 = scmp.ne.s32.totalorder %s130, %s144
      %p146 = scmp.eq.s32.totalorder %s31, 0
      %p147 = por %p145, %p146
      %s149 = sadd.s32 %s148, 1
      %p152 = scmp.eq.s32.totalorder %s25, 1
      %p153 = scmp.ne.s32.totalorder %s148, %s150
      %p154 = scmp.eq.s32.totalorder %s25, 0
      %p155 = por %p153, %p154
      %p156 = scmp.ne.s32.totalorder %s148, %s150
      %p157 = scmp.eq.s32.totalorder %s30, 1
      %p158 = por %p156, %p157
      %p159 = scmp.ne.s32.totalorder %s150, %s151
      %p160 = scmp.eq.s32.totalorder %s30, 0
      %p161 = por %p159, %p160
      %p162 = scmp.ne.s32.totalorder %s150, %s151
      %p163 = scmp.eq.s32.totalorder %s31, 1
      %p164 = por %p162, %p163
      %p166 = scmp.ne.s32.totalorder %s151, %s165
      %p167 = scmp.eq.s32.totalorder %s31, 0
      %p168 = por %p166, %p167
      %s170 = sadd.s32 %s169, 1
      %p173 = scmp.eq.s32.totalorder %s25, 1
      %p174 = scmp.ne.s32.totalorder %s169, %s171
      %p175 = scmp.eq.s32.totalorder %s25, 0
      %p176 = por %p174, %p175
      %p177 = scmp.ne.s32.totalorder %s169, %s171
      %p178 = scmp.eq.s32.totalorder %s30, 1
      %p179 = por %p177, %p178
      %p180 = scmp.ne.s32.totalorder %s171, %s172
      %p181 = scmp.eq.s32.totalorder %s30, 0
      %p182 = por %p180, %p181
      %p183 = scmp.ne.s32.totalorder %s171, %s172
      %p184 = scmp.eq.s32.totalorder %s31, 1
      %p185 = por %p183, %p184
      %p187 = scmp.ne.s32.totalorder %s172, %s186
      %p188 = scmp.eq.s32.totalorder %s31, 0
      %p189 = por %p187, %p188
      %s191 = sadd.s32 %s190, 1
      %p194 = scmp.eq.s32.totalorder %s25, 1
      %p195 = scmp.ne.s32.totalorder %s190, %s192
      %p196 = scmp.eq.s32.totalorder %s25, 0
      %p197 = por %p195, %p196
      %p198 = scmp.ne.s32.totalorder %s190, %s192
      %p199 = scmp.eq.s32.totalorder %s30, 1
      %p200 = por %p198, %p199
      %p201 = scmp.ne.s32.totalorder %s192, %s193
      %p202 = scmp.eq.s32.totalorder %s30, 0
      %p203 = por %p201, %p202
      %p204 = scmp.ne.s32.totalorder %s192, %s193
      %p205 = scmp.eq.s32.totalorder %s31, 1
      %p206 = por %p204, %p205
      %p208 = scmp.ne.s32.totalorder %s193, %s207
      %p209 = scmp.eq.s32.totalorder %s31, 0
      %p210 = por %p208, %p209
      %s212 = sadd.s32 %s211, 1
      %p215 = scmp.eq.s32.totalorder %s25, 1
      %p216 = scmp.ne.s32.totalorder %s211, %s213
      %p217 = scmp.eq.s32.totalorder %s25, 0
      %p218 = por %p216, %p217
      %p219 = scmp.ne.s32.totalorder %s211, %s213
      %p220 = scmp.eq.s32.totalorder %s30, 1
      %p221 = por %p219, %p220
      %p222 = scmp.ne.s32.totalorder %s213, %s214
      %p223 = scmp.eq.s32.totalorder %s30, 0
      %p224 = por %p222, %p223
      %p225 = scmp.ne.s32.totalorder %s213, %s214
      %p226 = scmp.eq.s32.totalorder %s31, 1
      %p227 = por %p225, %p226
      %p229 = scmp.ne.s32.totalorder %s214, %s228
      %p230 = scmp.eq.s32.totalorder %s31, 0
      %p231 = por %p229, %p230
      %s232 = ssub.s32 %s25, %s32
      %p233 = scmp.eq.s32.totalorder %s232, 0
      %s235 = sadd.s32 %s234, 1
      %s236 = scalar_select %p233, %s234, %s235
      %p239 = pneg %p233
      %p240 = scmp.eq.s32.totalorder %s25, 1
      %p241 = por %p239, %p240
      %p242 = scmp.ne.s32.totalorder %s234, %s237
      %p243 = scmp.eq.s32.totalorder %s25, 0
      %p244 = por %p242, %p243
      %p245 = scmp.ne.s32.totalorder %s234, %s237
      %p246 = scmp.eq.s32.totalorder %s30, 1
      %p247 = por %p245, %p246
      %p248 = scmp.ne.s32.totalorder %s237, %s238
      %p249 = scmp.eq.s32.totalorder %s30, 0
      %p250 = por %p248, %p249
      %p251 = scmp.ne.s32.totalorder %s237, %s238
      %p252 = scmp.eq.s32.totalorder %s31, 1
      %p253 = por %p251, %p252
      %p255 = scmp.ne.s32.totalorder %s238, %s254
      %p256 = scmp.eq.s32.totalorder %s31, 0
      %p257 = por %p255, %p256
      %p258 = scmp.le.s32.totalorder 1, %s25
      %p259 = scmp.lt.s32.totalorder %s25, 3
      %p260 = pnand %p258, %p259
      %p261 = pneg %p260
      // Predicated region
      $region9: #{tpu_custom_call.1} parent=5 // pred_check
        _
      $region10: #{tpu_custom_call.1} parent=5 // pred_check_branch
        %263 = sbr.rel (%p260) target = $region12
      $region11: #{tpu_custom_call.1} parent=5 // pred_region
        %s264 = ssub.s32 %s25, 1
        // Predicated region
        $region13: #{tpu_custom_call.1} parent=11 // pred_check
          %p265 = pneg %p98
        $region14: #{tpu_custom_call.1} parent=11 // pred_check_branch
          %267 = sbr.rel (%p265) target = $region16
        $region15: #{tpu_custom_call.1} parent=11 // pred_region
          %s269 = ssub.s32 1024, 1024
          %270 = vsyncadd [#allocation6], %s269
          %s271 = sshll.u32 [#allocation7], 4
          %s272 = int_to_ptr.vmem [resolvable:$true] %s271
          %277 = dma.hbm_to_vmem [thread:$0]  %s2, 1024, %s272, [#allocation6], 128, 128, 8
        $region16: #{tpu_custom_call.1} parent=11 // pred_fallthru
          _
        // Predicated region
        $region17: #{tpu_custom_call.1} parent=11 // pred_check
          %p278 = pneg %p119
        $region18: #{tpu_custom_call.1} parent=11 // pred_check_branch
          %280 = sbr.rel (%p278) target = $region20
        $region19: #{tpu_custom_call.1} parent=11 // pred_region
          %s282 = ssub.s32 9216, 9216
          %283 = vsyncadd [#allocation9], %s282
          %s284 = sshll.u32 [#allocation8], 4
          %s285 = int_to_ptr.vmem [resolvable:$true] %s284
          %290 = dma.hbm_to_vmem [thread:$0]  %s3, 9216, %s285, [#allocation9], 512, 512, 32
        $region20: #{tpu_custom_call.1} parent=11 // pred_fallthru
          _
        // Predicated region
        $region21: #{tpu_custom_call.1} parent=11 // pred_check
          %p291 = pneg %p140
        $region22: #{tpu_custom_call.1} parent=11 // pred_check_branch
          %293 = sbr.rel (%p291) target = $region24
        $region23: #{tpu_custom_call.1} parent=11 // pred_region
          %s295 = ssub.s32 4608, 4608
          %296 = vsyncadd [#allocation9], %s295
          %s297 = sshll.u32 [#allocation10], 4
          %s298 = int_to_ptr.vmem [resolvable:$true] %s297
          %303 = dma.hbm_to_vmem [thread:$0]  %s4, 4608, %s298, [#allocation9], 512, 512, 32
        $region24: #{tpu_custom_call.1} parent=11 // pred_fallthru
          _
        // Predicated region
        $region25: #{tpu_custom_call.1} parent=11 // pred_check
          %p304 = pneg %p161
        $region26: #{tpu_custom_call.1} parent=11 // pred_check_branch
          %306 = sbr.rel (%p304) target = $region28
        $region27: #{tpu_custom_call.1} parent=11 // pred_region
          _
        $region28: #{tpu_custom_call.1} parent=11 // pred_fallthru
          _
        // Predicated region
        $region29: #{tpu_custom_call.1} parent=11 // pred_check
          %p307 = pneg %p182
        $region30: #{tpu_custom_call.1} parent=11 // pred_check_branch
          %309 = sbr.rel (%p307) target = $region32
        $region31: #{tpu_custom_call.1} parent=11 // pred_region
          _
        $region32: #{tpu_custom_call.1} parent=11 // pred_fallthru
          _
        // Predicated region
        $region33: #{tpu_custom_call.1} parent=11 // pred_check
          %p310 = pneg %p203
        $region34: #{tpu_custom_call.1} parent=11 // pred_check_branch
          %312 = sbr.rel (%p310) target = $region36
        $region35: #{tpu_custom_call.1} parent=11 // pred_region
          _
        $region36: #{tpu_custom_call.1} parent=11 // pred_fallthru
          _
        // Predicated region
        $region37: #{tpu_custom_call.1} parent=11 // pred_check
          %p313 = pneg %p224
        $region38: #{tpu_custom_call.1} parent=11 // pred_check_branch
          %315 = sbr.rel (%p313) target = $region40
        $region39: #{tpu_custom_call.1} parent=11 // pred_region
          _
        $region40: #{tpu_custom_call.1} parent=11 // pred_fallthru
          _
      $region12: #{tpu_custom_call.1} parent=5 // pred_fallthru
        _
      %p316 = scmp.lt.s32.totalorder %s25, 2
      // Predicated region
      $region41: #{tpu_custom_call.1} parent=5 // pred_check
        %p317 = pneg %p316
      $region42: #{tpu_custom_call.1} parent=5 // pred_check_branch
        %319 = sbr.rel (%p317) target = $region44
      $region43: #{tpu_custom_call.1} parent=5 // pred_region
        // Predicated region
        $region45: #{tpu_custom_call.1} parent=43 // pred_check
          %p320 = pneg %p45
        $region46: #{tpu_custom_call.1} parent=43 // pred_check_branch
          %322 = sbr.rel (%p320) target = $region48
        $region47: #{tpu_custom_call.1} parent=43 // pred_region
          %s323 = sand.u32 %s35, 1
          %s324 = scalar_lea.sflag [#allocation3], %s323
          %s325 = sand.u32 %s35, 1
          %s326 = smul.addr %s325, 16
          %s327 = scalar_lea.vmem [#allocation2], %s326
          %s328 = smul.u32 2, %s25
          %s330 = ssub.s32 256, 256
          %331 = vsyncadd %s324, %s330
          %s332 = smul.addr %s328, 128
          %s333 = scalar_lea.hbm %s0, %s332
          %s334 = sshll.u32 %s327, 4
          %s335 = int_to_ptr.vmem [resolvable:$true] %s334
          %340 = dma.hbm_to_vmem [thread:$0]  %s333, 256, %s335, %s324, 128, 128, 8
        $region48: #{tpu_custom_call.1} parent=43 // pred_fallthru
          _
        // Predicated region
        $region49: #{tpu_custom_call.1} parent=43 // pred_check
          %p341 = pneg %p71
        $region50: #{tpu_custom_call.1} parent=43 // pred_check_branch
          %343 = sbr.rel (%p341) target = $region52
        $region51: #{tpu_custom_call.1} parent=43 // pred_region
          %s344 = sand.u32 %s25, 1
          %s345 = scalar_lea.sflag [#allocation6], %s344
          %s346 = sand.u32 %s61, 1
          %s347 = smul.addr %s346, 32
          %s348 = scalar_lea.vmem [#allocation5], %s347
          %s349 = smul.u32 2, %s25
          %s351 = ssub.s32 512, 512
          %352 = vsyncadd %s345, %s351
          %s353 = smul.addr %s349, 2
          %s354 = smul.addr %s353, 128
          %s355 = scalar_lea.hbm %s1, %s354
          %s356 = sshll.u32 %s348, 4
          %s357 = int_to_ptr.vmem [resolvable:$true] %s356
          %362 = dma.hbm_to_vmem [thread:$0]  %s355, 512, %s357, %s345, 256, 256, 16
        $region52: #{tpu_custom_call.1} parent=43 // pred_fallthru
          _
      $region44: #{tpu_custom_call.1} parent=5 // pred_fallthru
        _
      %p363 = scmp.le.s32.totalorder 1, %s25
      %p364 = scmp.lt.s32.totalorder %s25, 3
      %p365 = pnand %p363, %p364
      %p366 = pneg %p365
      // Predicated region
      $region53: #{tpu_custom_call.1} parent=5 // pred_check
        _
      $region54: #{tpu_custom_call.1} parent=5 // pred_check_branch
        %368 = sbr.rel (%p365) target = $region56
      $region55: #{tpu_custom_call.1} parent=5 // pred_region
        %s369 = ssub.s32 %s25, 1
        %s370 = sand.u32 %s38, 1
        %s371 = scalar_lea.sflag [#allocation3], %s370
        %s372 = sand.u32 %s38, 1
        %s373 = smul.addr %s372, 16
        %s374 = scalar_lea.vmem [#allocation2], %s373
        // Predicated region
        $region57: #{tpu_custom_call.1} parent=55 // pred_check
          %p375 = pneg %p51
        $region58: #{tpu_custom_call.1} parent=55 // pred_check_branch
          %377 = sbr.rel (%p375) target = $region60
        $region59: #{tpu_custom_call.1} parent=55 // pred_region
          %378 = dma.done %s371, 256
        $region60: #{tpu_custom_call.1} parent=55 // pred_fallthru
          _
        %s379 = sand.u32 %s30, 1
        %s380 = scalar_lea.sflag [#allocation6], %s379
        %s381 = sand.u32 %s64, 1
        %s382 = smul.addr %s381, 32
        %s383 = scalar_lea.vmem [#allocation5], %s382
        // Predicated region
        $region61: #{tpu_custom_call.1} parent=55 // pred_check
          %p384 = pneg %p77
        $region62: #{tpu_custom_call.1} parent=55 // pred_check_branch
          %386 = sbr.rel (%p384) target = $region64
        $region63: #{tpu_custom_call.1} parent=55 // pred_region
          %387 = dma.done %s380, 512
        $region64: #{tpu_custom_call.1} parent=55 // pred_fallthru
          _
        // Predicated region
        $region65: #{tpu_custom_call.1} parent=55 // pred_check
          %p388 = pneg %p98
        $region66: #{tpu_custom_call.1} parent=55 // pred_check_branch
          %390 = sbr.rel (%p388) target = $region68
        $region67: #{tpu_custom_call.1} parent=55 // pred_region
          %391 = dma.done [#allocation6], 1024
        $region68: #{tpu_custom_call.1} parent=55 // pred_fallthru
          _
        // Predicated region
        $region69: #{tpu_custom_call.1} parent=55 // pred_check
          %p392 = pneg %p119
        $region70: #{tpu_custom_call.1} parent=55 // pred_check_branch
          %394 = sbr.rel (%p392) target = $region72
        $region71: #{tpu_custom_call.1} parent=55 // pred_region
          %395 = dma.done [#allocation9], 9216
        $region72: #{tpu_custom_call.1} parent=55 // pred_fallthru
          _
        // Predicated region
        $region73: #{tpu_custom_call.1} parent=55 // pred_check
          %p396 = pneg %p140
        $region74: #{tpu_custom_call.1} parent=55 // pred_check_branch
          %398 = sbr.rel (%p396) target = $region76
        $region75: #{tpu_custom_call.1} parent=55 // pred_region
          %399 = dma.done [#allocation9], 4608
        $region76: #{tpu_custom_call.1} parent=55 // pred_fallthru
          _
        %s400 = sand.u32 %s38, 1
        %s401 = scalar_lea.sflag [#allocation3], %s400
        %s402 = sand.u32 %s38, 1
        %s403 = smul.addr %s402, 16
        %s404 = scalar_lea.vmem [#allocation2], %s403
        %p405 = pneg %p51
        %p406 = pneg %p48
        %s407 = sand.u32 %s30, 1
        %s408 = scalar_lea.sflag [#allocation6], %s407
        %s409 = sand.u32 %s64, 1
        %s410 = smul.addr %s409, 32
        %s411 = scalar_lea.vmem [#allocation5], %s410
        %p412 = pneg %p77
        %p413 = pneg %p74
        %p414 = pneg %p98
        %p415 = pneg %p95
        %p416 = pneg %p119
        %p417 = pneg %p116
        %p418 = pneg %p140
        %p419 = pneg %p137
        %p420 = pneg %p161
        %p421 = pneg %p158
        %p422 = pneg %p182
        %p423 = pneg %p179
        %p424 = pneg %p203
        %p425 = pneg %p200
        %p426 = pneg %p224
        %p427 = pneg %p221
        %p428 = pneg %p250
        %p429 = pneg %p247
        %s430 = sand.u32 %s237, 1
        %s431 = scalar_lea.sflag [#allocation4], %s430
        %s432 = sand.u32 %s237, 1
        %s433 = smul.addr %s432, 32
        %s434 = scalar_lea.vmem [#allocation11], %s433
        %s435 = smul.u32 2, %s30
        %s436 = smul.u32 2, %s30
        %s437 = smul.u32 2, %s30
        %v439 = vld [vmem:[%s374] sm:$0xff]
        %v440 = vpack.c.bf16 %v439, %v439
        %v441 = vld [vmem:[#allocation7] sm:$0xff]
        %v442 = vld [vmem:[#allocation7 + $0x8] sm:$0xff]
        %v443 = vld [vmem:[#allocation7 + $0x10] sm:$0xff]
        %v444 = vld [vmem:[#allocation7 + $0x18] sm:$0xff]
        %v445 = vld [vmem:[#allocation7 + $0x20] sm:$0xff]
        %v446 = vld [vmem:[#allocation7 + $0x28] sm:$0xff]
        %v447 = vld [vmem:[#allocation7 + $0x30] sm:$0xff]
        %v448 = vld [vmem:[#allocation7 + $0x38] sm:$0xff]
        %v457 = vunpack.c.l.b16 %v441
        %v458 = vunpack.c.h.b16 %v441
        %v459 = vunpack.c.l.b16 %v442
        %v460 = vunpack.c.h.b16 %v442
        %v461 = vunpack.c.l.b16 %v443
        %v462 = vunpack.c.h.b16 %v443
        %v463 = vunpack.c.l.b16 %v444
        %v464 = vunpack.c.h.b16 %v444
        %v465 = vunpack.c.l.b16 %v445
        %v466 = vunpack.c.h.b16 %v445
        %v467 = vunpack.c.l.b16 %v446
        %v468 = vunpack.c.h.b16 %v446
        %v469 = vunpack.c.l.b16 %v447
        %v470 = vunpack.c.h.b16 %v447
        %v471 = vunpack.c.l.b16 %v448
        %v472 = vunpack.c.h.b16 %v448
        %v473 = vpack.c.b16 %v459, %v457
        %v474 = vpack.c.b16 %v460, %v458
        %v475 = vpack.c.b16 %v463, %v461
        %v476 = vpack.c.b16 %v464, %v462
        %v477 = vpack.c.b16 %v467, %v465
        %v478 = vpack.c.b16 %v468, %v466
        %v479 = vpack.c.b16 %v471, %v469
        %v480 = vpack.c.b16 %v472, %v470
        %vm489 = vcmask 523264
        %v491 = vsel %vm489, %v440, 0
        %493 = vmatprep.subr.bf16.mxu0 %v474
        %494 = vmatpush1.bf16.msra.mxu0 %v473
        %495 = vmatprep.subr.bf16.mxu0 %v476
        %496 = vmatpush1.bf16.msra.mxu0 %v475
        %497 = vmatprep.subr.bf16.mxu0 %v478
        %498 = vmatpush1.bf16.msra.mxu0 %v477
        %499 = vmatprep.subr.bf16.mxu0 %v480
        %500 = vmatpush1.bf16.msra.mxu0 %v479
        %501 = vmatprep.subr.bf16.mxu0 0
        %502 = vmatpush1.bf16.msra.mxu0 0
        %503 = vmatprep.subr.bf16.mxu0 0
        %504 = vmatpush1.bf16.msra.mxu0 0
        %505 = vmatprep.subr.bf16.mxu0 0
        %506 = vmatpush1.bf16.msra.mxu0 0
        %507 = vmatprep.subr.bf16.mxu0 0
        %508 = vmatpush1.bf16.msra.mxu0 0
        %509 = vmatprep.subr.bf16.mxu0 0
        %510 = vmatpush1.bf16.msra.mxu0 0
        %511 = vmatprep.subr.bf16.mxu0 0
        %512 = vmatpush1.bf16.msra.mxu0 0
        %513 = vmatprep.subr.bf16.mxu0 0
        %514 = vmatpush1.bf16.msra.mxu0 0
        %515 = vmatprep.subr.bf16.mxu0 0
        %516 = vmatpush1.bf16.msra.mxu0 0
        %517 = vmatprep.subr.bf16.mxu0 0
        %518 = vmatpush1.bf16.msra.mxu0 0
        %519 = vmatprep.subr.bf16.mxu0 0
        %520 = vmatpush1.bf16.msra.mxu0 0
        %521 = vmatprep.subr.bf16.mxu0 0
        %522 = vmatpush1.bf16.msra.mxu0 0
        %523 = vmatprep.subr.bf16.mxu0 0
        %524 = vmatpush1.bf16.msra.mxu0 0
        %525 = vmatprep.mubr.bf16.mxu0 0
        %526 = vmatmul.mubr.bf16.gmra.mrb[0].mxu0 %v491
        %v527 = vpop.f32.mrb[0].mxu0
        %v528 = vadd.f32 0.0, %v527
        %v529 = vpop.f32.mrb[0].mxu0
        %v530 = vadd.f32 0.0, %v529
        %v531 = vpop.f32.mrb[0].mxu0
        %v532 = vpop.f32.mrb[0].mxu0
        %533 = vdwg.mxu0
        %s534 = scalar_lea.vmem %s374, 8 [#allocation2]
        %v535 = vld [vmem:[%s534] sm:$0xff]
        %v536 = vpack.c.bf16 %v535, %v535
        %v538 = vsel %vm489, %v536, 0
        %540 = vmatprep.subr.bf16.mxu0 %v474
        %541 = vmatpush1.bf16.msra.mxu0 %v473
        %542 = vmatprep.subr.bf16.mxu0 %v476
        %543 = vmatpush1.bf16.msra.mxu0 %v475
        %544 = vmatprep.subr.bf16.mxu0 %v478
        %545 = vmatpush1.bf16.msra.mxu0 %v477
        %546 = vmatprep.subr.bf16.mxu0 %v480
        %547 = vmatpush1.bf16.msra.mxu0 %v479
        %548 = vmatprep.subr.bf16.mxu0 0
        %549 = vmatpush1.bf16.msra.mxu0 0
        %550 = vmatprep.subr.bf16.mxu0 0
        %551 = vmatpush1.bf16.msra.mxu0 0
        %552 = vmatprep.subr.bf16.mxu0 0
        %553 = vmatpush1.bf16.msra.mxu0 0
        %554 = vmatprep.subr.bf16.mxu0 0
        %555 = vmatpush1.bf16.msra.mxu0 0
        %556 = vmatprep.subr.bf16.mxu0 0
        %557 = vmatpush1.bf16.msra.mxu0 0
        %558 = vmatprep.subr.bf16.mxu0 0
        %559 = vmatpush1.bf16.msra.mxu0 0
        %560 = vmatprep.subr.bf16.mxu0 0
        %561 = vmatpush1.bf16.msra.mxu0 0
        %562 = vmatprep.subr.bf16.mxu0 0
        %563 = vmatpush1.bf16.msra.mxu0 0
        %564 = vmatprep.subr.bf16.mxu0 0
        %565 = vmatpush1.bf16.msra.mxu0 0
        %566 = vmatprep.subr.bf16.mxu0 0
        %567 = vmatpush1.bf16.msra.mxu0 0
        %568 = vmatprep.subr.bf16.mxu0 0
        %569 = vmatpush1.bf16.msra.mxu0 0
        %570 = vmatprep.subr.bf16.mxu0 0
        %571 = vmatpush1.bf16.msra.mxu0 0
        %572 = vmatprep.mubr.bf16.mxu0 0
        %573 = vmatmul.mubr.bf16.gmra.mrb[0].mxu0 %v538
        %v574 = vpop.f32.mrb[0].mxu0
        %v575 = vadd.f32 0.0, %v574
        %v576 = vpop.f32.mrb[0].mxu0
        %v577 = vadd.f32 0.0, %v576
        %v578 = vpop.f32.mrb[0].mxu0
        %v579 = vpop.f32.mrb[0].mxu0
        %580 = vdwg.mxu0
        %v581 = vld [vmem:[%s383] sm:$0xff]
        %v582 = vld [vmem:[%s383 + $0x8] sm:$0xff]
        %s583 = scalar_lea.vmem %s383, 16 [#allocation5]
        %v584 = vld [vmem:[%s583] sm:$0xff]
        %v585 = vld [vmem:[%s583 + $0x8] sm:$0xff]
        %v586 = vld [vmem:[%s5] sm:$0xff]
        %v587 = vld [vmem:[%s6] sm:$0xff]
        %v588 = vld [vmem:[#allocation8] sm:$0xff]
        %v589 = vld [vmem:[#allocation8 + $0x8] sm:$0xff]
        %v590 = vld [vmem:[#allocation8 + $0x10] sm:$0xff]
        %v591 = vld [vmem:[#allocation8 + $0x18] sm:$0xff]
        %v592 = vld [vmem:[#allocation8 + $0x20] sm:$0xff]
        %v593 = vld [vmem:[#allocation8 + $0x28] sm:$0xff]
        %v594 = vld [vmem:[#allocation8 + $0x30] sm:$0xff]
        %v595 = vld [vmem:[#allocation8 + $0x38] sm:$0xff]
        %v596 = vld [vmem:[#allocation8 + $0x40] sm:$0xff]
        %v597 = vld [vmem:[#allocation8 + $0x48] sm:$0xff]
        %v598 = vld [vmem:[#allocation8 + $0x50] sm:$0xff]
        %v599 = vld [vmem:[#allocation8 + $0x58] sm:$0xff]
        %v600 = vld [vmem:[#allocation8 + $0x60] sm:$0xff]
        %v601 = vld [vmem:[#allocation8 + $0x68] sm:$0xff]
        %v602 = vld [vmem:[#allocation8 + $0x70] sm:$0xff]
        %v603 = vld [vmem:[#allocation8 + $0x78] sm:$0xff]
        %v604 = vld [vmem:[#allocation8 + $0x80] sm:$0xff]
        %v605 = vld [vmem:[#allocation8 + $0x88] sm:$0xff]
        %v606 = vld [vmem:[#allocation8 + $0x90] sm:$0xff]
        %v607 = vld [vmem:[#allocation8 + $0x98] sm:$0xff]
        %v608 = vld [vmem:[#allocation8 + $0xa0] sm:$0xff]
        %v609 = vld [vmem:[#allocation8 + $0xa8] sm:$0xff]
        %v610 = vld [vmem:[#allocation8 + $0xb0] sm:$0xff]
        %v611 = vld [vmem:[#allocation8 + $0xb8] sm:$0xff]
        %v612 = vld [vmem:[#allocation8 + $0xc0] sm:$0xff]
        %v613 = vld [vmem:[#allocation8 + $0xc8] sm:$0xff]
        %v614 = vld [vmem:[#allocation8 + $0xd0] sm:$0xff]
        %v615 = vld [vmem:[#allocation8 + $0xd8] sm:$0xff]
        %v616 = vld [vmem:[#allocation8 + $0xe0] sm:$0xff]
        %v617 = vld [vmem:[#allocation8 + $0xe8] sm:$0xff]
        %v618 = vld [vmem:[#allocation8 + $0xf0] sm:$0xff]
        %v619 = vld [vmem:[#allocation8 + $0xf8] sm:$0xff]
        %v620 = vld [vmem:[#allocation8 + $0x100] sm:$0xff]
        %v621 = vld [vmem:[#allocation8 + $0x108] sm:$0xff]
        %v622 = vld [vmem:[#allocation8 + $0x110] sm:$0xff]
        %v623 = vld [vmem:[#allocation8 + $0x118] sm:$0xff]
        %v624 = vld [vmem:[#allocation8 + $0x120] sm:$0xff]
        %v625 = vld [vmem:[#allocation8 + $0x128] sm:$0xff]
        %v626 = vld [vmem:[#allocation8 + $0x130] sm:$0xff]
        %v627 = vld [vmem:[#allocation8 + $0x138] sm:$0xff]
        %v628 = vld [vmem:[#allocation8 + $0x140] sm:$0xff]
        %v629 = vld [vmem:[#allocation8 + $0x148] sm:$0xff]
        %v630 = vld [vmem:[#allocation8 + $0x150] sm:$0xff]
        %v631 = vld [vmem:[#allocation8 + $0x158] sm:$0xff]
        %v632 = vld [vmem:[#allocation8 + $0x160] sm:$0xff]
        %v633 = vld [vmem:[#allocation8 + $0x168] sm:$0xff]
        %v634 = vld [vmem:[#allocation8 + $0x170] sm:$0xff]
        %v635 = vld [vmem:[#allocation8 + $0x178] sm:$0xff]
        %v636 = vld [vmem:[#allocation8 + $0x180] sm:$0xff]
        %v637 = vld [vmem:[#allocation8 + $0x188] sm:$0xff]
        %v638 = vld [vmem:[#allocation8 + $0x190] sm:$0xff]
        %v639 = vld [vmem:[#allocation8 + $0x198] sm:$0xff]
        %v640 = vld [vmem:[#allocation8 + $0x1a0] sm:$0xff]
        %v641 = vld [vmem:[#allocation8 + $0x1a8] sm:$0xff]
        %v642 = vld [vmem:[#allocation8 + $0x1b0] sm:$0xff]
        %v643 = vld [vmem:[#allocation8 + $0x1b8] sm:$0xff]
        %v644 = vld [vmem:[#allocation8 + $0x1c0] sm:$0xff]
        %v645 = vld [vmem:[#allocation8 + $0x1c8] sm:$0xff]
        %v646 = vld [vmem:[#allocation8 + $0x1d0] sm:$0xff]
        %v647 = vld [vmem:[#allocation8 + $0x1d8] sm:$0xff]
        %v648 = vld [vmem:[#allocation8 + $0x1e0] sm:$0xff]
        %v649 = vld [vmem:[#allocation8 + $0x1e8] sm:$0xff]
        %v650 = vld [vmem:[#allocation8 + $0x1f0] sm:$0xff]
        %v651 = vld [vmem:[#allocation8 + $0x1f8] sm:$0xff]
        %v652 = vld [vmem:[#allocation8 + $0x200] sm:$0xff]
        %v653 = vld [vmem:[#allocation8 + $0x208] sm:$0xff]
        %v654 = vld [vmem:[#allocation8 + $0x210] sm:$0xff]
        %v655 = vld [vmem:[#allocation8 + $0x218] sm:$0xff]
        %v656 = vld [vmem:[#allocation8 + $0x220] sm:$0xff]
        %v657 = vld [vmem:[#allocation8 + $0x228] sm:$0xff]
        %v658 = vld [vmem:[#allocation8 + $0x230] sm:$0xff]
        %v659 = vld [vmem:[#allocation8 + $0x238] sm:$0xff]
        %660 = vrot.lane.b32.xlu0 %v581, 17
        %v661 = vpop.permute.xlu0 %660
        %662 = vrot.lane.b32.xlu0 %v528, 17
        %v663 = vpop.permute.xlu0 %662
        %664 = vrot.lane.b32.xlu0 %v582, 17
        %v665 = vpop.permute.xlu0 %664
        %666 = vrot.lane.b32.xlu0 %v530, 17
        %v667 = vpop.permute.xlu0 %666
        %668 = vrot.lane.b32.xlu0 %v584, 17
        %v669 = vpop.permute.xlu0 %668
        %670 = vrot.lane.b32.xlu0 %v575, 17
        %v671 = vpop.permute.xlu0 %670
        %672 = vrot.lane.b32.xlu0 %v585, 17
        %v673 = vpop.permute.xlu0 %672
        %674 = vrot.lane.b32.xlu0 %v577, 17
        %v675 = vpop.permute.xlu0 %674
        %v676 = vlaneseq
        %v677 = vand.u32 %v676, 127
        %vm678 = vcmp.lt.s32.totalorder %v677, 17
        %v679 = vsel %vm678, %v669, %v673
        %v680 = vsel %vm678, %v671, %v675
        %v681 = vsel %vm678, %v665, %v669
        %v682 = vsel %vm678, %v667, %v671
        %v683 = vsel %vm678, %v661, %v665
        %v684 = vsel %vm678, %v663, %v667
        %v685 = vsel %vm678, %v673, %v661
        %v686 = vsel %vm678, %v675, %v663
        %687 = vrot.lane.b32.xlu0 %v581, 16
        %v688 = vpop.permute.xlu0 %687
        %689 = vrot.lane.b32.xlu0 %v528, 16
        %v690 = vpop.permute.xlu0 %689
        %691 = vrot.lane.b32.xlu0 %v582, 16
        %v692 = vpop.permute.xlu0 %691
        %693 = vrot.lane.b32.xlu0 %v530, 16
        %v694 = vpop.permute.xlu0 %693
        %695 = vrot.lane.b32.xlu0 %v584, 16
        %v696 = vpop.permute.xlu0 %695
        %697 = vrot.lane.b32.xlu0 %v575, 16
        %v698 = vpop.permute.xlu0 %697
        %699 = vrot.lane.b32.xlu0 %v585, 16
        %v700 = vpop.permute.xlu0 %699
        %701 = vrot.lane.b32.xlu0 %v577, 16
        %v702 = vpop.permute.xlu0 %701
        %vm703 = vcmp.lt.s32.totalorder %v677, 16
        %v704 = vsel %vm703, %v696, %v700
        %v705 = vsel %vm703, %v698, %v702
        %v706 = vsel %vm703, %v692, %v696
        %v707 = vsel %vm703, %v694, %v698
        %v708 = vsel %vm703, %v688, %v692
        %v709 = vsel %vm703, %v690, %v694
        %v710 = vsel %vm703, %v700, %v688
        %v711 = vsel %vm703, %v702, %v690
        %712 = vrot.lane.b32.xlu0 %v581, 15
        %v713 = vpop.permute.xlu0 %712
        %714 = vrot.lane.b32.xlu0 %v528, 15
        %v715 = vpop.permute.xlu0 %714
        %716 = vrot.lane.b32.xlu0 %v582, 15
        %v717 = vpop.permute.xlu0 %716
        %718 = vrot.lane.b32.xlu0 %v530, 15
        %v719 = vpop.permute.xlu0 %718
        %720 = vrot.lane.b32.xlu0 %v584, 15
        %v721 = vpop.permute.xlu0 %720
        %722 = vrot.lane.b32.xlu0 %v575, 15
        %v723 = vpop.permute.xlu0 %722
        %724 = vrot.lane.b32.xlu0 %v585, 15
        %v725 = vpop.permute.xlu0 %724
        %726 = vrot.lane.b32.xlu0 %v577, 15
        %v727 = vpop.permute.xlu0 %726
        %vm728 = vcmp.lt.s32.totalorder %v677, 15
        %v729 = vsel %vm728, %v721, %v725
        %v730 = vsel %vm728, %v723, %v727
        %v731 = vsel %vm728, %v717, %v721
        %v732 = vsel %vm728, %v719, %v723
        %v733 = vsel %vm728, %v713, %v717
        %v734 = vsel %vm728, %v715, %v719
        %v735 = vsel %vm728, %v725, %v713
        %v736 = vsel %vm728, %v727, %v715
        %737 = vrot.lane.b32.xlu0 %v581, 1
        %v738 = vpop.permute.xlu0 %737
        %739 = vrot.lane.b32.xlu0 %v528, 1
        %v740 = vpop.permute.xlu0 %739
        %741 = vrot.lane.b32.xlu0 %v582, 1
        %v742 = vpop.permute.xlu0 %741
        %743 = vrot.lane.b32.xlu0 %v530, 1
        %v744 = vpop.permute.xlu0 %743
        %745 = vrot.lane.b32.xlu0 %v584, 1
        %v746 = vpop.permute.xlu0 %745
        %747 = vrot.lane.b32.xlu0 %v575, 1
        %v748 = vpop.permute.xlu0 %747
        %749 = vrot.lane.b32.xlu0 %v585, 1
        %v750 = vpop.permute.xlu0 %749
        %751 = vrot.lane.b32.xlu0 %v577, 1
        %v752 = vpop.permute.xlu0 %751
        %vm753 = vcmp.lt.s32.totalorder %v677, 1
        %v754 = vsel %vm753, %v746, %v750
        %v755 = vsel %vm753, %v748, %v752
        %v756 = vsel %vm753, %v742, %v746
        %v757 = vsel %vm753, %v744, %v748
        %v758 = vsel %vm753, %v738, %v742
        %v759 = vsel %vm753, %v740, %v744
        %v760 = vsel %vm753, %v750, %v738
        %v761 = vsel %vm753, %v752, %v740
        %762 = vrot.lane.b32.xlu0 %v581, 127
        %v763 = vpop.permute.xlu0 %762
        %764 = vrot.lane.b32.xlu0 %v528, 127
        %v765 = vpop.permute.xlu0 %764
        %766 = vrot.lane.b32.xlu0 %v582, 127
        %v767 = vpop.permute.xlu0 %766
        %768 = vrot.lane.b32.xlu0 %v530, 127
        %v769 = vpop.permute.xlu0 %768
        %770 = vrot.lane.b32.xlu0 %v584, 127
        %v771 = vpop.permute.xlu0 %770
        %772 = vrot.lane.b32.xlu0 %v575, 127
        %v773 = vpop.permute.xlu0 %772
        %774 = vrot.lane.b32.xlu0 %v585, 127
        %v775 = vpop.permute.xlu0 %774
        %776 = vrot.lane.b32.xlu0 %v577, 127
        %v777 = vpop.permute.xlu0 %776
        %vm778 = vcmp.lt.s32.totalorder %v677, 127
        %v779 = vsel %vm778, %v771, %v775
        %v780 = vsel %vm778, %v773, %v777
        %v781 = vsel %vm778, %v767, %v771
        %v782 = vsel %vm778, %v769, %v773
        %v783 = vsel %vm778, %v763, %v767
        %v784 = vsel %vm778, %v765, %v769
        %v785 = vsel %vm778, %v775, %v763
        %v786 = vsel %vm778, %v777, %v765
        %787 = vrot.lane.b32.xlu0 %v581, 113
        %v788 = vpop.permute.xlu0 %787
        %789 = vrot.lane.b32.xlu0 %v528, 113
        %v790 = vpop.permute.xlu0 %789
        %791 = vrot.lane.b32.xlu0 %v582, 113
        %v792 = vpop.permute.xlu0 %791
        %793 = vrot.lane.b32.xlu0 %v530, 113
        %v794 = vpop.permute.xlu0 %793
        %795 = vrot.lane.b32.xlu0 %v584, 113
        %v796 = vpop.permute.xlu0 %795
        %797 = vrot.lane.b32.xlu0 %v575, 113
        %v798 = vpop.permute.xlu0 %797
        %799 = vrot.lane.b32.xlu0 %v585, 113
        %v800 = vpop.permute.xlu0 %799
        %801 = vrot.lane.b32.xlu0 %v577, 113
        %v802 = vpop.permute.xlu0 %801
        %vm803 = vcmp.lt.s32.totalorder %v677, 113
        %v804 = vsel %vm803, %v796, %v800
        %v805 = vsel %vm803, %v798, %v802
        %v806 = vsel %vm803, %v792, %v796
        %v807 = vsel %vm803, %v794, %v798
        %v808 = vsel %vm803, %v788, %v792
        %v809 = vsel %vm803, %v790, %v794
        %v810 = vsel %vm803, %v800, %v788
        %v811 = vsel %vm803, %v802, %v790
        %812 = vrot.lane.b32.xlu0 %v581, 112
        %v813 = vpop.permute.xlu0 %812
        %814 = vrot.lane.b32.xlu0 %v528, 112
        %v815 = vpop.permute.xlu0 %814
        %816 = vrot.lane.b32.xlu0 %v582, 112
        %v817 = vpop.permute.xlu0 %816
        %818 = vrot.lane.b32.xlu0 %v530, 112
        %v819 = vpop.permute.xlu0 %818
        %820 = vrot.lane.b32.xlu0 %v584, 112
        %v821 = vpop.permute.xlu0 %820
        %822 = vrot.lane.b32.xlu0 %v575, 112
        %v823 = vpop.permute.xlu0 %822
        %824 = vrot.lane.b32.xlu0 %v585, 112
        %v825 = vpop.permute.xlu0 %824
        %826 = vrot.lane.b32.xlu0 %v577, 112
        %v827 = vpop.permute.xlu0 %826
        %vm828 = vcmp.lt.s32.totalorder %v677, 112
        %v829 = vsel %vm828, %v821, %v825
        %v830 = vsel %vm828, %v823, %v827
        %v831 = vsel %vm828, %v817, %v821
        %v832 = vsel %vm828, %v819, %v823
        %v833 = vsel %vm828, %v813, %v817
        %v834 = vsel %vm828, %v815, %v819
        %v835 = vsel %vm828, %v825, %v813
        %v836 = vsel %vm828, %v827, %v815
        %837 = vrot.lane.b32.xlu0 %v581, 111
        %v838 = vpop.permute.xlu0 %837
        %839 = vrot.lane.b32.xlu0 %v528, 111
        %v840 = vpop.permute.xlu0 %839
        %841 = vrot.lane.b32.xlu0 %v582, 111
        %v842 = vpop.permute.xlu0 %841
        %843 = vrot.lane.b32.xlu0 %v530, 111
        %v844 = vpop.permute.xlu0 %843
        %845 = vrot.lane.b32.xlu0 %v584, 111
        %v846 = vpop.permute.xlu0 %845
        %847 = vrot.lane.b32.xlu0 %v575, 111
        %v848 = vpop.permute.xlu0 %847
        %849 = vrot.lane.b32.xlu0 %v585, 111
        %v850 = vpop.permute.xlu0 %849
        %851 = vrot.lane.b32.xlu0 %v577, 111
        %v852 = vpop.permute.xlu0 %851
        %vm853 = vcmp.lt.s32.totalorder %v677, 111
        %v854 = vsel %vm853, %v846, %v850
        %v855 = vsel %vm853, %v848, %v852
        %v856 = vsel %vm853, %v842, %v846
        %v857 = vsel %vm853, %v844, %v848
        %v858 = vsel %vm853, %v838, %v842
        %v859 = vsel %vm853, %v840, %v844
        %v860 = vsel %vm853, %v850, %v838
        %v861 = vsel %vm853, %v852, %v840
        %v862 = vmul.f32 %v685, %v588
        %v863 = vmul.f32 %v683, %v589
        %v864 = vmul.f32 %v681, %v590
        %v865 = vmul.f32 %v679, %v591
        %v866 = vmul.f32 %v686, %v592
        %v867 = vmul.f32 %v684, %v593
        %v868 = vmul.f32 %v682, %v594
        %v869 = vmul.f32 %v680, %v595
        %v870 = vmul.f32 %v710, %v596
        %v871 = vmul.f32 %v708, %v597
        %v872 = vmul.f32 %v706, %v598
        %v873 = vmul.f32 %v704, %v599
        %v874 = vmul.f32 %v711, %v600
        %v875 = vmul.f32 %v709, %v601
        %v876 = vmul.f32 %v707, %v602
        %v877 = vmul.f32 %v705, %v603
        %v878 = vmul.f32 %v735, %v604
        %v879 = vmul.f32 %v733, %v605
        %v880 = vmul.f32 %v731, %v606
        %v881 = vmul.f32 %v729, %v607
        %v882 = vmul.f32 %v736, %v608
        %v883 = vmul.f32 %v734, %v609
        %v884 = vmul.f32 %v732, %v610
        %v885 = vmul.f32 %v730, %v611
        %v886 = vmul.f32 %v760, %v612
        %v887 = vmul.f32 %v758, %v613
        %v888 = vmul.f32 %v756, %v614
        %v889 = vmul.f32 %v754, %v615
        %v890 = vmul.f32 %v761, %v616
        %v891 = vmul.f32 %v759, %v617
        %v892 = vmul.f32 %v757, %v618
        %v893 = vmul.f32 %v755, %v619
        %v894 = vmul.f32 %v581, %v620
        %v895 = vmul.f32 %v582, %v621
        %v896 = vmul.f32 %v584, %v622
        %v897 = vmul.f32 %v585, %v623
        %v898 = vmul.f32 %v528, %v624
        %v899 = vmul.f32 %v530, %v625
        %v900 = vmul.f32 %v575, %v626
        %v901 = vmul.f32 %v577, %v627
        %v902 = vmul.f32 %v783, %v628
        %v903 = vmul.f32 %v781, %v629
        %v904 = vmul.f32 %v779, %v630
        %v905 = vmul.f32 %v785, %v631
        %v906 = vmul.f32 %v784, %v632
        %v907 = vmul.f32 %v782, %v633
        %v908 = vmul.f32 %v780, %v634
        %v909 = vmul.f32 %v786, %v635
        %v910 = vmul.f32 %v808, %v636
        %v911 = vmul.f32 %v806, %v637
        %v912 = vmul.f32 %v804, %v638
        %v913 = vmul.f32 %v810, %v639
        %v914 = vmul.f32 %v809, %v640
        %v915 = vmul.f32 %v807, %v641
        %v916 = vmul.f32 %v805, %v642
        %v917 = vmul.f32 %v811, %v643
        %v918 = vmul.f32 %v833, %v644
        %v919 = vmul.f32 %v831, %v645
        %v920 = vmul.f32 %v829, %v646
        %v921 = vmul.f32 %v835, %v647
        %v922 = vmul.f32 %v834, %v648
        %v923 = vmul.f32 %v832, %v649
        %v924 = vmul.f32 %v830, %v650
        %v925 = vmul.f32 %v836, %v651
        %v926 = vmul.f32 %v858, %v652
        %v927 = vmul.f32 %v856, %v653
        %v928 = vmul.f32 %v854, %v654
        %v929 = vmul.f32 %v860, %v655
        %v930 = vmul.f32 %v859, %v656
        %v931 = vmul.f32 %v857, %v657
        %v932 = vmul.f32 %v855, %v658
        %v933 = vmul.f32 %v861, %v659
        %v934 = vpack.c.bf16 %v866, %v862
        %v935 = vpack.c.bf16 %v867, %v863
        %v936 = vpack.c.bf16 %v868, %v864
        %v937 = vpack.c.bf16 %v869, %v865
        %v938 = vpack.c.bf16 %v874, %v870
        %v939 = vpack.c.bf16 %v875, %v871
        %v940 = vpack.c.bf16 %v876, %v872
        %v941 = vpack.c.bf16 %v877, %v873
        %v942 = vpack.c.bf16 %v882, %v878
        %v943 = vpack.c.bf16 %v883, %v879
        %v944 = vpack.c.bf16 %v884, %v880
        %v945 = vpack.c.bf16 %v885, %v881
        %v946 = vpack.c.bf16 %v890, %v886
        %v947 = vpack.c.bf16 %v891, %v887
        %v948 = vpack.c.bf16 %v892, %v888
        %v949 = vpack.c.bf16 %v893, %v889
        %v950 = vpack.c.bf16 %v898, %v894
        %v951 = vpack.c.bf16 %v899, %v895
        %v952 = vpack.c.bf16 %v900, %v896
        %v953 = vpack.c.bf16 %v901, %v897
        %v954 = vpack.c.bf16 %v906, %v902
        %v955 = vpack.c.bf16 %v907, %v903
        %v956 = vpack.c.bf16 %v908, %v904
        %v957 = vpack.c.bf16 %v909, %v905
        %v958 = vpack.c.bf16 %v914, %v910
        %v959 = vpack.c.bf16 %v915, %v911
        %v960 = vpack.c.bf16 %v916, %v912
        %v961 = vpack.c.bf16 %v917, %v913
        %v962 = vpack.c.bf16 %v922, %v918
        %v963 = vpack.c.bf16 %v923, %v919
        %v964 = vpack.c.bf16 %v924, %v920
        %v965 = vpack.c.bf16 %v925, %v921
        %v966 = vpack.c.bf16 %v930, %v926
        %v967 = vpack.c.bf16 %v931, %v927
        %v968 = vpack.c.bf16 %v932, %v928
        %v969 = vpack.c.bf16 %v933, %v929
        %971 = vset.pattern.permute.xlu0 0
        %972 = vperm.xlu0 %971, %v587
        %v973 = vpop.permute.xlu0 %972
        %v976 = vunpack.c.l.b16 %v586
        %v977 = vunpack.c.h.b16 %v586
        %v978 = vpack.c.b16 %v976, %v976
        %v979 = vpack.c.b16 %v977, %v977
        %vm981 = vcmask 130048
        %v983 = vsel %vm981, %v979, 0
        %985 = vmatprep.subr.bf16.mxu0 %v935
        %986 = vmatpush1.bf16.msra.mxu0 %v934
        %987 = vmatprep.subr.bf16.mxu0 %v939
        %988 = vmatpush1.bf16.msra.mxu0 %v938
        %989 = vmatprep.subr.bf16.mxu0 %v943
        %990 = vmatpush1.bf16.msra.mxu0 %v942
        %991 = vmatprep.subr.bf16.mxu0 %v947
        %992 = vmatpush1.bf16.msra.mxu0 %v946
        %993 = vmatprep.subr.bf16.mxu0 %v951
        %994 = vmatpush1.bf16.msra.mxu0 %v950
        %995 = vmatprep.subr.bf16.mxu0 %v955
        %996 = vmatpush1.bf16.msra.mxu0 %v954
        %997 = vmatprep.subr.bf16.mxu0 %v959
        %998 = vmatpush1.bf16.msra.mxu0 %v958
        %999 = vmatprep.subr.bf16.mxu0 %v963
        %1000 = vmatpush1.bf16.msra.mxu0 %v962
        %1001 = vmatprep.subr.bf16.mxu0 %v967
        %1002 = vmatpush1.bf16.msra.mxu0 %v966
        %1003 = vmatprep.subr.bf16.mxu0 0
        %1004 = vmatpush1.bf16.msra.mxu0 0
        %1005 = vmatprep.subr.bf16.mxu0 0
        %1006 = vmatpush1.bf16.msra.mxu0 0
        %1007 = vmatprep.subr.bf16.mxu0 0
        %1008 = vmatpush1.bf16.msra.mxu0 0
        %1009 = vmatprep.subr.bf16.mxu0 0
        %1010 = vmatpush1.bf16.msra.mxu0 0
        %1011 = vmatprep.subr.bf16.mxu0 0
        %1012 = vmatpush1.bf16.msra.mxu0 0
        %1013 = vmatprep.subr.bf16.mxu0 0
        %1014 = vmatpush1.bf16.msra.mxu0 0
        %1015 = vmatprep.subr.bf16.mxu0 0
        %1016 = vmatpush1.bf16.msra.mxu0 0
        %1017 = vmatprep.mubr.bf16.mxu0 %v983
        %1018 = vmatmul.mubr.bf16.gmra.mrb[0].mxu0 %v978
        %v1019 = vpop.f32.mrb[0].mxu0
        %v1020 = vadd.f32 %v973, %v1019
        %v1021 = vpop.f32.mrb[0].mxu0
        %v1022 = vadd.f32 %v973, %v1021
        %v1023 = vpop.f32.mrb[0].mxu0
        %v1024 = vpop.f32.mrb[0].mxu0
        %1025 = vdwg.mxu0
        %1026 = vmatprep.subr.bf16.mxu0 %v937
        %1027 = vmatpush1.bf16.msra.mxu0 %v936
        %1028 = vmatprep.subr.bf16.mxu0 %v941
        %1029 = vmatpush1.bf16.msra.mxu0 %v940
        %1030 = vmatprep.subr.bf16.mxu0 %v945
        %1031 = vmatpush1.bf16.msra.mxu0 %v944
        %1032 = vmatprep.subr.bf16.mxu0 %v949
        %1033 = vmatpush1.bf16.msra.mxu0 %v948
        %1034 = vmatprep.subr.bf16.mxu0 %v953
        %1035 = vmatpush1.bf16.msra.mxu0 %v952
        %1036 = vmatprep.subr.bf16.mxu0 %v957
        %1037 = vmatpush1.bf16.msra.mxu0 %v956
        %1038 = vmatprep.subr.bf16.mxu0 %v961
        %1039 = vmatpush1.bf16.msra.mxu0 %v960
        %1040 = vmatprep.subr.bf16.mxu0 %v965
        %1041 = vmatpush1.bf16.msra.mxu0 %v964
        %1042 = vmatprep.subr.bf16.mxu0 %v969
        %1043 = vmatpush1.bf16.msra.mxu0 %v968
        %1044 = vmatprep.subr.bf16.mxu0 0
        %1045 = vmatpush1.bf16.msra.mxu0 0
        %1046 = vmatprep.subr.bf16.mxu0 0
        %1047 = vmatpush1.bf16.msra.mxu0 0
        %1048 = vmatprep.subr.bf16.mxu0 0
        %1049 = vmatpush1.bf16.msra.mxu0 0
        %1050 = vmatprep.subr.bf16.mxu0 0
        %1051 = vmatpush1.bf16.msra.mxu0 0
        %1052 = vmatprep.subr.bf16.mxu0 0
        %1053 = vmatpush1.bf16.msra.mxu0 0
        %1054 = vmatprep.subr.bf16.mxu0 0
        %1055 = vmatpush1.bf16.msra.mxu0 0
        %1056 = vmatprep.subr.bf16.mxu0 0
        %1057 = vmatpush1.bf16.msra.mxu0 0
        %1058 = vmatprep.mubr.bf16.mxu0 %v983
        %1059 = vmatmul.mubr.bf16.gmra.mrb[0].mxu0 %v978
        %v1060 = vpop.f32.mrb[0].mxu0
        %v1061 = vadd.f32 %v973, %v1060
        %v1062 = vpop.f32.mrb[0].mxu0
        %v1063 = vadd.f32 %v973, %v1062
        %v1064 = vpop.f32.mrb[0].mxu0
        %v1065 = vpop.f32.mrb[0].mxu0
        %1066 = vdwg.mxu0
        %v1067 = vmax.f32 %v1020, 0.0
        %v1068 = vmax.f32 %v1022, 0.0
        %v1069 = vmax.f32 %v1061, 0.0
        %v1070 = vmax.f32 %v1063, 0.0
        %v1071 = vld [vmem:[%s7] sm:$0xf]
        %v1072 = vld [vmem:[%s8] sm:$0xff]
        %v1073 = vld [vmem:[#allocation10] sm:$0xff]
        %v1074 = vld [vmem:[#allocation10 + $0x8] sm:$0xff]
        %v1075 = vld [vmem:[#allocation10 + $0x10] sm:$0xff]
        %v1076 = vld [vmem:[#allocation10 + $0x18] sm:$0xff]
        %v1077 = vld [vmem:[#allocation10 + $0x20] sm:$0xff]
        %v1078 = vld [vmem:[#allocation10 + $0x28] sm:$0xff]
        %v1079 = vld [vmem:[#allocation10 + $0x30] sm:$0xff]
        %v1080 = vld [vmem:[#allocation10 + $0x38] sm:$0xff]
        %v1081 = vld [vmem:[#allocation10 + $0x40] sm:$0xff]
        %v1082 = vld [vmem:[#allocation10 + $0x48] sm:$0xff]
        %v1083 = vld [vmem:[#allocation10 + $0x50] sm:$0xff]
        %v1084 = vld [vmem:[#allocation10 + $0x58] sm:$0xff]
        %v1085 = vld [vmem:[#allocation10 + $0x60] sm:$0xff]
        %v1086 = vld [vmem:[#allocation10 + $0x68] sm:$0xff]
        %v1087 = vld [vmem:[#allocation10 + $0x70] sm:$0xff]
        %v1088 = vld [vmem:[#allocation10 + $0x78] sm:$0xff]
        %v1089 = vld [vmem:[#allocation10 + $0x80] sm:$0xff]
        %v1090 = vld [vmem:[#allocation10 + $0x88] sm:$0xff]
        %v1091 = vld [vmem:[#allocation10 + $0x90] sm:$0xff]
        %v1092 = vld [vmem:[#allocation10 + $0x98] sm:$0xff]
        %v1093 = vld [vmem:[#allocation10 + $0xa0] sm:$0xff]
        %v1094 = vld [vmem:[#allocation10 + $0xa8] sm:$0xff]
        %v1095 = vld [vmem:[#allocation10 + $0xb0] sm:$0xff]
        %v1096 = vld [vmem:[#allocation10 + $0xb8] sm:$0xff]
        %v1097 = vld [vmem:[#allocation10 + $0xc0] sm:$0xff]
        %v1098 = vld [vmem:[#allocation10 + $0xc8] sm:$0xff]
        %v1099 = vld [vmem:[#allocation10 + $0xd0] sm:$0xff]
        %v1100 = vld [vmem:[#allocation10 + $0xd8] sm:$0xff]
        %v1101 = vld [vmem:[#allocation10 + $0xe0] sm:$0xff]
        %v1102 = vld [vmem:[#allocation10 + $0xe8] sm:$0xff]
        %v1103 = vld [vmem:[#allocation10 + $0xf0] sm:$0xff]
        %v1104 = vld [vmem:[#allocation10 + $0xf8] sm:$0xff]
        %v1105 = vld [vmem:[#allocation10 + $0x100] sm:$0xff]
        %v1106 = vld [vmem:[#allocation10 + $0x108] sm:$0xff]
        %v1107 = vld [vmem:[#allocation10 + $0x110] sm:$0xff]
        %v1108 = vld [vmem:[#allocation10 + $0x118] sm:$0xff]
        %1109 = vrot.lane.b32.xlu0 %v1067, 17
        %v1110 = vpop.permute.xlu0 %1109
        %1111 = vrot.lane.b32.xlu0 %v1068, 17
        %v1112 = vpop.permute.xlu0 %1111
        %1113 = vrot.lane.b32.xlu0 %v1069, 17
        %v1114 = vpop.permute.xlu0 %1113
        %1115 = vrot.lane.b32.xlu0 %v1070, 17
        %v1116 = vpop.permute.xlu0 %1115
        %v1117 = vsel %vm678, %v1114, %v1116
        %v1118 = vsel %vm678, %v1112, %v1114
        %v1119 = vsel %vm678, %v1110, %v1112
        %v1120 = vsel %vm678, %v1116, %v1110
        %1121 = vrot.lane.b32.xlu0 %v1067, 16
        %v1122 = vpop.permute.xlu0 %1121
        %1123 = vrot.lane.b32.xlu0 %v1068, 16
        %v1124 = vpop.permute.xlu0 %1123
        %1125 = vrot.lane.b32.xlu0 %v1069, 16
        %v1126 = vpop.permute.xlu0 %1125
        %1127 = vrot.lane.b32.xlu0 %v1070, 16
        %v1128 = vpop.permute.xlu0 %1127
        %v1129 = vsel %vm703, %v1126, %v1128
        %v1130 = vsel %vm703, %v1124, %v1126
        %v1131 = vsel %vm703, %v1122, %v1124
        %v1132 = vsel %vm703, %v1128, %v1122
        %1133 = vrot.lane.b32.xlu0 %v1067, 15
        %v1134 = vpop.permute.xlu0 %1133
        %1135 = vrot.lane.b32.xlu0 %v1068, 15
        %v1136 = vpop.permute.xlu0 %1135
        %1137 = vrot.lane.b32.xlu0 %v1069, 15
        %v1138 = vpop.permute.xlu0 %1137
        %1139 = vrot.lane.b32.xlu0 %v1070, 15
        %v1140 = vpop.permute.xlu0 %1139
        %v1141 = vsel %vm728, %v1138, %v1140
        %v1142 = vsel %vm728, %v1136, %v1138
        %v1143 = vsel %vm728, %v1134, %v1136
        %v1144 = vsel %vm728, %v1140, %v1134
        %1145 = vrot.lane.b32.xlu0 %v1067, 1
        %v1146 = vpop.permute.xlu0 %1145
        %1147 = vrot.lane.b32.xlu0 %v1068, 1
        %v1148 = vpop.permute.xlu0 %1147
        %1149 = vrot.lane.b32.xlu0 %v1069, 1
        %v1150 = vpop.permute.xlu0 %1149
        %1151 = vrot.lane.b32.xlu0 %v1070, 1
        %v1152 = vpop.permute.xlu0 %1151
        %v1153 = vsel %vm753, %v1150, %v1152
        %v1154 = vsel %vm753, %v1148, %v1150
        %v1155 = vsel %vm753, %v1146, %v1148
        %v1156 = vsel %vm753, %v1152, %v1146
        %1157 = vrot.lane.b32.xlu0 %v1067, 127
        %v1158 = vpop.permute.xlu0 %1157
        %1159 = vrot.lane.b32.xlu0 %v1068, 127
        %v1160 = vpop.permute.xlu0 %1159
        %1161 = vrot.lane.b32.xlu0 %v1069, 127
        %v1162 = vpop.permute.xlu0 %1161
        %1163 = vrot.lane.b32.xlu0 %v1070, 127
        %v1164 = vpop.permute.xlu0 %1163
        %v1165 = vsel %vm778, %v1162, %v1164
        %v1166 = vsel %vm778, %v1160, %v1162
        %v1167 = vsel %vm778, %v1158, %v1160
        %v1168 = vsel %vm778, %v1164, %v1158
        %1169 = vrot.lane.b32.xlu0 %v1067, 113
        %v1170 = vpop.permute.xlu0 %1169
        %1171 = vrot.lane.b32.xlu0 %v1068, 113
        %v1172 = vpop.permute.xlu0 %1171
        %1173 = vrot.lane.b32.xlu0 %v1069, 113
        %v1174 = vpop.permute.xlu0 %1173
        %1175 = vrot.lane.b32.xlu0 %v1070, 113
        %v1176 = vpop.permute.xlu0 %1175
        %v1177 = vsel %vm803, %v1174, %v1176
        %v1178 = vsel %vm803, %v1172, %v1174
        %v1179 = vsel %vm803, %v1170, %v1172
        %v1180 = vsel %vm803, %v1176, %v1170
        %1181 = vrot.lane.b32.xlu0 %v1067, 112
        %v1182 = vpop.permute.xlu0 %1181
        %1183 = vrot.lane.b32.xlu0 %v1068, 112
        %v1184 = vpop.permute.xlu0 %1183
        %1185 = vrot.lane.b32.xlu0 %v1069, 112
        %v1186 = vpop.permute.xlu0 %1185
        %1187 = vrot.lane.b32.xlu0 %v1070, 112
        %v1188 = vpop.permute.xlu0 %1187
        %v1189 = vsel %vm828, %v1186, %v1188
        %v1190 = vsel %vm828, %v1184, %v1186
        %v1191 = vsel %vm828, %v1182, %v1184
        %v1192 = vsel %vm828, %v1188, %v1182
        %1193 = vrot.lane.b32.xlu0 %v1067, 111
        %v1194 = vpop.permute.xlu0 %1193
        %1195 = vrot.lane.b32.xlu0 %v1068, 111
        %v1196 = vpop.permute.xlu0 %1195
        %1197 = vrot.lane.b32.xlu0 %v1069, 111
        %v1198 = vpop.permute.xlu0 %1197
        %1199 = vrot.lane.b32.xlu0 %v1070, 111
        %v1200 = vpop.permute.xlu0 %1199
        %v1201 = vsel %vm853, %v1198, %v1200
        %v1202 = vsel %vm853, %v1196, %v1198
        %v1203 = vsel %vm853, %v1194, %v1196
        %v1204 = vsel %vm853, %v1200, %v1194
        %v1205 = vmul.f32 %v1120, %v1073
        %v1206 = vmul.f32 %v1119, %v1074
        %v1207 = vmul.f32 %v1118, %v1075
        %v1208 = vmul.f32 %v1117, %v1076
        %v1209 = vmul.f32 %v1132, %v1077
        %v1210 = vmul.f32 %v1131, %v1078
        %v1211 = vmul.f32 %v1130, %v1079
        %v1212 = vmul.f32 %v1129, %v1080
        %v1213 = vmul.f32 %v1144, %v1081
        %v1214 = vmul.f32 %v1143, %v1082
        %v1215 = vmul.f32 %v1142, %v1083
        %v1216 = vmul.f32 %v1141, %v1084
        %v1217 = vmul.f32 %v1156, %v1085
        %v1218 = vmul.f32 %v1155, %v1086
        %v1219 = vmul.f32 %v1154, %v1087
        %v1220 = vmul.f32 %v1153, %v1088
        %v1221 = vmul.f32 %v1067, %v1089
        %v1222 = vmul.f32 %v1068, %v1090
        %v1223 = vmul.f32 %v1069, %v1091
        %v1224 = vmul.f32 %v1070, %v1092
        %v1225 = vmul.f32 %v1167, %v1093
        %v1226 = vmul.f32 %v1166, %v1094
        %v1227 = vmul.f32 %v1165, %v1095
        %v1228 = vmul.f32 %v1168, %v1096
        %v1229 = vmul.f32 %v1179, %v1097
        %v1230 = vmul.f32 %v1178, %v1098
        %v1231 = vmul.f32 %v1177, %v1099
        %v1232 = vmul.f32 %v1180, %v1100
        %v1233 = vmul.f32 %v1191, %v1101
        %v1234 = vmul.f32 %v1190, %v1102
        %v1235 = vmul.f32 %v1189, %v1103
        %v1236 = vmul.f32 %v1192, %v1104
        %v1237 = vmul.f32 %v1203, %v1105
        %v1238 = vmul.f32 %v1202, %v1106
        %v1239 = vmul.f32 %v1201, %v1107
        %v1240 = vmul.f32 %v1204, %v1108
        %v1241 = vpack.c.bf16 %v1209, %v1205
        %v1242 = vpack.c.bf16 %v1210, %v1206
        %v1243 = vpack.c.bf16 %v1211, %v1207
        %v1244 = vpack.c.bf16 %v1212, %v1208
        %v1245 = vpack.c.bf16 %v1217, %v1213
        %v1246 = vpack.c.bf16 %v1218, %v1214
        %v1247 = vpack.c.bf16 %v1219, %v1215
        %v1248 = vpack.c.bf16 %v1220, %v1216
        %v1249 = vpack.c.bf16 %v1225, %v1221
        %v1250 = vpack.c.bf16 %v1226, %v1222
        %v1251 = vpack.c.bf16 %v1227, %v1223
        %v1252 = vpack.c.bf16 %v1228, %v1224
        %v1253 = vpack.c.bf16 %v1233, %v1229
        %v1254 = vpack.c.bf16 %v1234, %v1230
        %v1255 = vpack.c.bf16 %v1235, %v1231
        %v1256 = vpack.c.bf16 %v1236, %v1232
        %v1257 = vpack.c.bf16 %v1237, %v1237
        %v1258 = vpack.c.bf16 %v1238, %v1238
        %v1259 = vpack.c.bf16 %v1239, %v1239
        %v1260 = vpack.c.bf16 %v1240, %v1240
        %1262 = vset.pattern.permute.xlu0 0
        %1263 = vperm.xlu0 %1262, %v1072
        %v1264 = vpop.permute.xlu0 %1263
        %vm1266 = vcmask 588800
        %v1268 = vsel %vm1266, %v1071, 0
        %vm1270 = vcmask 1043456
        %v1272 = vsel %vm1270, %v1257, 0
        %v1275 = vsel %vm1270, %v1258, 0
        %v1278 = vsel %vm1270, %v1259, 0
        %v1281 = vsel %vm1270, %v1260, 0
        %1283 = vmatprep.subr.bf16.mxu0 %v1242
        %1284 = vmatpush1.bf16.msra.mxu0 %v1241
        %1285 = vmatprep.subr.bf16.mxu0 %v1246
        %1286 = vmatpush1.bf16.msra.mxu0 %v1245
        %1287 = vmatprep.subr.bf16.mxu0 %v1250
        %1288 = vmatpush1.bf16.msra.mxu0 %v1249
        %1289 = vmatprep.subr.bf16.mxu0 %v1254
        %1290 = vmatpush1.bf16.msra.mxu0 %v1253
        %1291 = vmatprep.subr.bf16.mxu0 %v1275
        %1292 = vmatpush1.bf16.msra.mxu0 %v1272
        %1293 = vmatprep.subr.bf16.mxu0 0
        %1294 = vmatpush1.bf16.msra.mxu0 0
        %1295 = vmatprep.subr.bf16.mxu0 0
        %1296 = vmatpush1.bf16.msra.mxu0 0
        %1297 = vmatprep.subr.bf16.mxu0 0
        %1298 = vmatpush1.bf16.msra.mxu0 0
        %1299 = vmatprep.subr.bf16.mxu0 0
        %1300 = vmatpush1.bf16.msra.mxu0 0
        %1301 = vmatprep.subr.bf16.mxu0 0
        %1302 = vmatpush1.bf16.msra.mxu0 0
        %1303 = vmatprep.subr.bf16.mxu0 0
        %1304 = vmatpush1.bf16.msra.mxu0 0
        %1305 = vmatprep.subr.bf16.mxu0 0
        %1306 = vmatpush1.bf16.msra.mxu0 0
        %1307 = vmatprep.subr.bf16.mxu0 0
        %1308 = vmatpush1.bf16.msra.mxu0 0
        %1309 = vmatprep.subr.bf16.mxu0 0
        %1310 = vmatpush1.bf16.msra.mxu0 0
        %1311 = vmatprep.subr.bf16.mxu0 0
        %1312 = vmatpush1.bf16.msra.mxu0 0
        %1313 = vmatprep.subr.bf16.mxu0 0
        %1314 = vmatpush1.bf16.msra.mxu0 0
        %1315 = vmatprep.mubr.bf16.mxu0 0
        %1316 = vmatmul.mubr.bf16.gmra.mrb[0].mxu0 %v1268
        %v1317 = vpop.f32.mrb[0].mxu0
        %v1318 = vadd.f32 %v1264, %v1317
        %v1319 = vpop.f32.mrb[0].mxu0
        %v1320 = vadd.f32 %v1264, %v1319
        %v1321 = vpop.f32.mrb[0].mxu0
        %v1322 = vpop.f32.mrb[0].mxu0
        %1323 = vdwg.mxu0
        %1324 = vmatprep.subr.bf16.mxu0 %v1244
        %1325 = vmatpush1.bf16.msra.mxu0 %v1243
        %1326 = vmatprep.subr.bf16.mxu0 %v1248
        %1327 = vmatpush1.bf16.msra.mxu0 %v1247
        %1328 = vmatprep.subr.bf16.mxu0 %v1252
        %1329 = vmatpush1.bf16.msra.mxu0 %v1251
        %1330 = vmatprep.subr.bf16.mxu0 %v1256
        %1331 = vmatpush1.bf16.msra.mxu0 %v1255
        %1332 = vmatprep.subr.bf16.mxu0 %v1281
        %1333 = vmatpush1.bf16.msra.mxu0 %v1278
        %1334 = vmatprep.subr.bf16.mxu0 0
        %1335 = vmatpush1.bf16.msra.mxu0 0
        %1336 = vmatprep.subr.bf16.mxu0 0
        %1337 = vmatpush1.bf16.msra.mxu0 0
        %1338 = vmatprep.subr.bf16.mxu0 0
        %1339 = vmatpush1.bf16.msra.mxu0 0
        %1340 = vmatprep.subr.bf16.mxu0 0
        %1341 = vmatpush1.bf16.msra.mxu0 0
        %1342 = vmatprep.subr.bf16.mxu0 0
        %1343 = vmatpush1.bf16.msra.mxu0 0
        %1344 = vmatprep.subr.bf16.mxu0 0
        %1345 = vmatpush1.bf16.msra.mxu0 0
        %1346 = vmatprep.subr.bf16.mxu0 0
        %1347 = vmatpush1.bf16.msra.mxu0 0
        %1348 = vmatprep.subr.bf16.mxu0 0
        %1349 = vmatpush1.bf16.msra.mxu0 0
        %1350 = vmatprep.subr.bf16.mxu0 0
        %1351 = vmatpush1.bf16.msra.mxu0 0
        %1352 = vmatprep.subr.bf16.mxu0 0
        %1353 = vmatpush1.bf16.msra.mxu0 0
        %1354 = vmatprep.subr.bf16.mxu0 0
        %1355 = vmatpush1.bf16.msra.mxu0 0
        %1356 = vmatprep.mubr.bf16.mxu0 0
        %1357 = vmatmul.mubr.bf16.gmra.mrb[0].mxu0 %v1268
        %v1358 = vpop.f32.mrb[0].mxu0
        %v1359 = vadd.f32 %v1264, %v1358
        %v1360 = vpop.f32.mrb[0].mxu0
        %v1361 = vadd.f32 %v1264, %v1360
        %v1362 = vpop.f32.mrb[0].mxu0
        %v1363 = vpop.f32.mrb[0].mxu0
        %1364 = vdwg.mxu0
        %v1365 = vmax.f32 %v1318, 0.0
        %v1366 = vmax.f32 %v1320, 0.0
        %v1367 = vmax.f32 %v1359, 0.0
        %v1368 = vmax.f32 %v1361, 0.0
        %1369 = vst [vmem:[%s434] sm:$0xff] %v1365
        %1370 = vst [vmem:[%s434 + $0x8] sm:$0xff] %v1366
        %s1371 = scalar_lea.vmem %s434, 16 [#allocation11]
        %1372 = vst [vmem:[%s1371] sm:$0xff] %v1367
        %1373 = vst [vmem:[%s1371 + $0x8] sm:$0xff] %v1368
        %s1374 = sand.u32 %s237, 1
        %s1375 = scalar_lea.sflag [#allocation4], %s1374
        %s1376 = sand.u32 %s237, 1
        %s1377 = smul.addr %s1376, 32
        %s1378 = scalar_lea.vmem [#allocation11], %s1377
        // Predicated region
        $region77: #{tpu_custom_call.1} parent=55 // pred_check
          %p1379 = pneg %p247
        $region78: #{tpu_custom_call.1} parent=55 // pred_check_branch
          %1381 = sbr.rel (%p1379) target = $region80
        $region79: #{tpu_custom_call.1} parent=55 // pred_region
          %s1382 = smul.u32 2, %s30
          %s1384 = ssub.s32 512, 512
          %1385 = vsyncadd %s1375, %s1384
          %s1386 = smul.addr %s1382, 2
          %s1387 = smul.addr %s1386, 128
          %s1388 = scalar_lea.hbm %s9, %s1387
          %s1389 = sshll.u32 %s1378, 4
          %s1390 = int_to_ptr.vmem [resolvable:$true] %s1389
          %1395 = dma.vmem_to_hbm [thread:$0]  %s1390, 512, %s1388, %s1375, 256, 256, 16
        $region80: #{tpu_custom_call.1} parent=55 // pred_fallthru
          _
      $region56: #{tpu_custom_call.1} parent=5 // pred_fallthru
        _
      %p1396 = scmp.le.s32.totalorder 2, %s25
      // Predicated region
      $region81: #{tpu_custom_call.1} parent=5 // pred_check
        %p1397 = pneg %p1396
      $region82: #{tpu_custom_call.1} parent=5 // pred_check_branch
        %1399 = sbr.rel (%p1397) target = $region84
      $region83: #{tpu_custom_call.1} parent=5 // pred_region
        %s1400 = ssub.s32 %s25, 2
        // Predicated region
        $region85: #{tpu_custom_call.1} parent=83 // pred_check
          %p1401 = pneg %p253
        $region86: #{tpu_custom_call.1} parent=83 // pred_check_branch
          %1403 = sbr.rel (%p1401) target = $region88
        $region87: #{tpu_custom_call.1} parent=83 // pred_region
          %s1404 = sand.u32 %s238, 1
          %s1405 = scalar_lea.sflag [#allocation4], %s1404
          %s1406 = sand.u32 %s238, 1
          %s1407 = smul.addr %s1406, 32
          %s1408 = scalar_lea.vmem [#allocation11], %s1407
          %1409 = dma.done %s1405, 512
        $region88: #{tpu_custom_call.1} parent=83 // pred_fallthru
          _
      $region84: #{tpu_custom_call.1} parent=5 // pred_fallthru
        _
    $region6: #{tpu_custom_call.1} parent=1 // loop_footer
      %s29 = sadd.s32 1, %s25
    $region7: #{tpu_custom_call.1} parent=1 // loop_footer_branch
      %24 = sbr.rel target = $region3
    $region8: #{tpu_custom_call.1} parent=1 // loop_exit
      _
    %1410 = vsyncpa [#allocation3], 1
    %s1411 = scalar_lea.sflag [#allocation3], 1
    %1412 = vsyncpa %s1411, 1
    %1413 = vsyncpa [#allocation6], 1
    %s1414 = scalar_lea.sflag [#allocation6], 1
    %1415 = vsyncpa %s1414, 1
    %1416 = vsyncpa [#allocation9], 1
    %1417 = vsyncpa [#allocation4], 1
    %s1418 = scalar_lea.sflag [#allocation4], 1
    %1419 = vsyncpa %s1418, 1

</llo_original>
